<compile_context>
chip_gen: v7x
topology: tpu7x:2x2x1
jax: 0.10.0
libtpu: 0.0.40
codegen_flags: <defaults>
</compile_context>

<pallas_src>
import math

import jax
import jax.numpy as jnp
from jax import lax
from jax.experimental import pallas as pl
from jax.experimental.pallas import tpu as pltpu

MXU_DTYPE = jnp.bfloat16      # matmul operand dtype (f32 accumulation on the MXU)
ACT_DTYPE = jnp.bfloat16      # dtype of intermediate activations stored in HBM
BN_EPS = 1e-5
_INV_SQRT2 = 1.0 / math.sqrt(2.0)
_VMEM_LIMIT = 32 * 1024 * 1024   # <= 32 MiB so the same tiling also fits v7x (64 MiB/TC)


def _gelu_exact(x):
    return 0.5 * x * (1.0 + lax.erf(x * _INV_SQRT2))


# ----------------------------------------------------------------------------
# Banded-weight builders (wrapper side, tiny tensors, run once per call).
# ----------------------------------------------------------------------------
def band_conv3_weight(w_hwio, W):
    """3x3 conv (padding=1) as a banded matrix.

    Rows are (dh, w_in_padded, ci) with w_in_padded in [0, W+2); columns are (w_out, co).
    B[(dh, w_in, ci), (w_out, co)] = w_hwio[dh, w_in - w_out, ci, co] if 0<=w_in-w_out<=2.
    """
    _, _, Ci, Co = w_hwio.shape
    Wp = W + 2
    dw = jnp.arange(Wp)[:, None] - jnp.arange(W)[None, :]           # (Wp, W): w_in - w_out
    valid = ((dw >= 0) & (dw <= 2)).astype(w_hwio.dtype)
    dwc = jnp.clip(dw, 0, 2)
    b = w_hwio[:, dwc, :, :]                                        # (3, Wp, W, Ci, Co)
    b = b * valid[None, :, :, None, None]
    b = jnp.transpose(b, (0, 1, 3, 2, 4))                           # (3, Wp, Ci, W, Co)
    return b.reshape(3 * Wp * Ci, W * Co)


def band_deconv2x2_weight(w_pt, W):
    """ConvTranspose2d(k=2, s=2) as a banded matrix.

    Rows are (w, ci); columns are (dh, w_out, co) with w_out in [0, 2W).
    B[(w, ci), (dh, w_out, co)] = w_pt[ci, co, dh, w_out - 2w] if w_out - 2w in {0, 1}.
    """
    Cin, Cout = w_pt.shape[0], w_pt.shape[1]
    W2 = 2 * W
    w_t = jnp.transpose(w_pt, (2, 3, 0, 1))                         # (dh, dw, Cin, Cout)
    dw = jnp.arange(W2)[None, :] - 2 * jnp.arange(W)[:, None]       # (W, W2): w_out - 2w
    valid = ((dw >= 0) & (dw <= 1)).astype(w_t.dtype)
    dwc = jnp.clip(dw, 0, 1)
    b = w_t[:, dwc] * valid[None, :, :, None, None]                 # (2, W, W2, Cin, Cout)
    b = jnp.transpose(b, (1, 3, 0, 2, 4))                           # (w, Cin, dh, W2, Cout)
    return b.reshape(W * Cin, 2 * W2 * Cout)


# ----------------------------------------------------------------------------
# Kernel 1: ConvTranspose2d(k=2, s=2) as one banded matmul per image, output written
# pre-interleaved, with per-image partial (sum, sumsq) rows for the following BatchNorm.
# ----------------------------------------------------------------------------
def _deconv_kernel(x_ref, w_ref, b_ref, o_ref, stats_ref):
    x = x_ref[0].astype(MXU_DTYPE)                                  # (H, W*Cin), lane-dense
    y = jnp.dot(x, w_ref[...], preferred_element_type=jnp.float32) + b_ref[...]
    o_ref[0] = y.astype(o_ref.dtype)                                # (H, 2*2W*Cout) dense
    stats_ref[0] = jnp.concatenate(
        [jnp.sum(y, axis=0, keepdims=True),
         jnp.sum(y * y, axis=0, keepdims=True)], axis=0)


def conv_transpose2x2(x_flat, w_pt, bias, *, H, W):
    """x_flat: (N, H, W*Cin).  Returns (y, stats):
       y (N, H, 2*2W*Cout) with columns (dh, w_out, c)  -> reshape (N, 2H, 2W*Cout) is free;
       stats (N, 2, 2*2W*Cout) per-image partial (sum, sumsq) rows."""
    N = x_flat.shape[0]
    Cin, Cout = w_pt.shape[0], w_pt.shape[1]
    W2 = 2 * W
    Ko = 2 * W2 * Cout

    bd = band_deconv2x2_weight(w_pt, W).astype(MXU_DTYPE)           # (W*Cin, Ko)
    b_row = jnp.tile(bias.astype(jnp.float32), 2 * W2).reshape(1, Ko)

    return pl.pallas_call(
        _deconv_kernel,
        out_shape=(jax.ShapeDtypeStruct((N, H, Ko), ACT_DTYPE),
                   jax.ShapeDtypeStruct((N, 2, Ko), jnp.float32)),
        grid=(N,),
        in_specs=[
            pl.BlockSpec((1, H, W * Cin), lambda n: (n, 0, 0)),
            pl.BlockSpec((W * Cin, Ko), lambda n: (0, 0)),
            pl.BlockSpec((1, Ko), lambda n: (0, 0)),
        ],
        out_specs=(pl.BlockSpec((1, H, Ko), lambda n: (n, 0, 0)),
                   pl.BlockSpec((1, 2, Ko), lambda n: (n, 0, 0))),
        compiler_params=pltpu.CompilerParams(
            dimension_semantics=("parallel",),
            vmem_limit_bytes=_VMEM_LIMIT),
    )(x_flat, bd, b_row)


# ----------------------------------------------------------------------------
# Kernel 2: fused [BN-affine -> 3x3 conv (padding=1, summed over several inputs) ->
# bias -> exact GELU], one banded matmul per image, lane-dense epilogue and store,
# optional per-image partial stats for the next BatchNorm.
# ----------------------------------------------------------------------------
def _make_conv_kernel(n_in, H, W, Cins, Cout, with_stats):
    Wp = W + 2

    def kernel(*refs):
        nx = 3 * n_in
        xs = refs[:nx]
        w_ref = refs[nx]
        b_ref = refs[nx + 1]
        o_ref = refs[nx + 2]
        stats_ref = refs[nx + 3] if with_stats else None
        L_ref = refs[nx + 3 + (1 if with_stats else 0)]

        # Re-zero the banded LHS every step (constant zero-pad regions + halo rows).
        # A one-shot program_id==0 init would be unsafe under "parallel" semantics
        # (per-core scratch); the lane-dense zero fill is a few tens of KiB.
        L_ref[...] = jnp.zeros_like(L_ref)

        col = 0
        for i in range(n_in):
            Ci = Cins[i]
            x_ref, sc_ref, sh_ref = xs[3 * i], xs[3 * i + 1], xs[3 * i + 2]
            # BatchNorm affine in f32 on the lane-dense (H, W*Ci) view.
            xa = x_ref[0].astype(jnp.float32) * sc_ref[...] + sh_ref[...]
            xa = xa.astype(L_ref.dtype)
            S = Wp * Ci
            lo = col + Ci                      # skip the left zero-pad column block
            hi = col + (W + 1) * Ci
            # dh = 0 tap: padded row h uses input row h-1 (top halo row stays zero).
            L_ref[1:H, lo:hi] = xa[0:H - 1]
            # dh = 1 tap: padded row h+1 uses input row h.
            L_ref[0:H, lo + S:hi + S] = xa
            # dh = 2 tap: padded row h+2 uses input row h+1 (bottom halo row stays zero).
            L_ref[0:H - 1, lo + 2 * S:hi + 2 * S] = xa[1:H]
            col += 3 * S

        # Single MXU matmul: (H, 3*(W+2)*sumCi) @ (..., W*Cout) -> lane-dense (H, W*Cout).
        y = jnp.dot(L_ref[...].astype(MXU_DTYPE), w_ref[...],
                    preferred_element_type=jnp.float32)
        y = y + b_ref[...]
        y = _gelu_exact(y)                                           # lane-dense epilogue

        if with_stats:
            stats_ref[0] = jnp.concatenate(
                [jnp.sum(y, axis=0, keepdims=True),
                 jnp.sum(y * y, axis=0, keepdims=True)], axis=0)

        o_ref[0] = y.astype(o_ref.dtype)

    return kernel


def conv3x3_bn_gelu(inputs, Cins, w_band, scales, shifts, bias, *,
                    H, W, Cout, out_dtype, with_stats):
    """inputs[i]: (N, H, W*Cins[i]).  w_band: (sum_i 3*(W+2)*Cins[i], W*Cout)."""
    n_in = len(inputs)
    N = inputs[0].shape[0]
    Ktot = w_band.shape[0]
    assert Ktot == sum(3 * (W + 2) * Ci for Ci in Cins)

    kernel = _make_conv_kernel(n_in, H, W, tuple(Cins), Cout, with_stats)

    args, in_specs = [], []
    for i in range(n_in):
        Ci = Cins[i]
        sc_row = jnp.tile(scales[i].astype(jnp.float32), W).reshape(1, W * Ci)
        sh_row = jnp.tile(shifts[i].astype(jnp.float32), W).reshape(1, W * Ci)
        args += [inputs[i], sc_row, sh_row]
        in_specs += [
            pl.BlockSpec((1, H, W * Ci), lambda n: (n, 0, 0)),
            pl.BlockSpec((1, W * Ci), lambda n: (0, 0)),
            pl.BlockSpec((1, W * Ci), lambda n: (0, 0)),
        ]
    args += [w_band.astype(MXU_DTYPE),
             jnp.tile(bias.astype(jnp.float32), W).reshape(1, W * Cout)]
    in_specs += [
        pl.BlockSpec((Ktot, W * Cout), lambda n: (0, 0)),
        pl.BlockSpec((1, W * Cout), lambda n: (0, 0)),
    ]

    if with_stats:
        out_shape = (jax.ShapeDtypeStruct((N, H, W * Cout), out_dtype),
                     jax.ShapeDtypeStruct((N, 2, W * Cout), jnp.float32))
        out_specs = (pl.BlockSpec((1, H, W * Cout), lambda n: (n, 0, 0)),
                     pl.BlockSpec((1, 2, W * Cout), lambda n: (n, 0, 0)))
    else:
        out_shape = jax.ShapeDtypeStruct((N, H, W * Cout), out_dtype)
        out_specs = pl.BlockSpec((1, H, W * Cout), lambda n: (n, 0, 0))

    res = pl.pallas_call(
        kernel,
        out_shape=out_shape,
        grid=(N,),
        in_specs=in_specs,
        out_specs=out_specs,
        scratch_shapes=[pltpu.VMEM((H, Ktot), jnp.float32)],
        compiler_params=pltpu.CompilerParams(
            dimension_semantics=("parallel",),
            vmem_limit_bytes=_VMEM_LIMIT),
    )(*args)

    if with_stats:
        return res
    return res, None


# ----------------------------------------------------------------------------
# BatchNorm (training mode, batch statistics) as a per-channel affine.
# ----------------------------------------------------------------------------
def bn_scale_shift(stats, count, gamma, beta, eps=BN_EPS):
    mean = stats[0] / count
    var = jnp.maximum(stats[1] / count - mean * mean, 0.0)          # biased variance
    scale = gamma.astype(jnp.float32) * lax.rsqrt(var + eps)
    shift = beta.astype(jnp.float32) - mean * scale
    return scale, shift


# ----------------------------------------------------------------------------
# UpBlock forward
# ----------------------------------------------------------------------------
def up_block_forward(x_nchw, skip_nchw, params):
    N, Cin, H, W = x_nchw.shape
    _, Cout, H2, W2 = skip_nchw.shape                 # Cout = outDim, H2 = 2H, W2 = 2W

    # NCHW -> lane-dense (N, H, W*C) row layout (boundary transposes left to XLA).
    x = jnp.transpose(x_nchw, (0, 2, 3, 1)).reshape(N, H, W * Cin)
    skip_nhwc = jnp.transpose(skip_nchw, (0, 2, 3, 1))
    skip = skip_nhwc.reshape(N, H2, W2 * Cout)

    # 1) ConvTranspose2d(k=2, s=2), output pre-interleaved, fused partial BN1 stats.
    up_raw, up_stats_raw = conv_transpose2x2(x, params["up_w"], params["up_b"], H=H, W=W)
    up = up_raw.reshape(N, H2, W2 * Cout)                           # free contiguous merge
    up_stats = up_stats_raw.reshape(N, 2, 2 * W2, Cout).sum(axis=(0, 2))

    # 2) BN1 `skip` half statistics: plain XLA reduction (per-channel, tiny).
    sf = skip_nhwc.astype(jnp.float32)
    skip_stats = jnp.stack([jnp.sum(sf, axis=(0, 1, 2)),
                            jnp.sum(sf * sf, axis=(0, 1, 2))])

    count = N * H2 * W2
    sc_up, sh_up = bn_scale_shift(up_stats, count,
                                  params["bn1_g"][:Cout], params["bn1_b"][:Cout])
    sc_sk, sh_sk = bn_scale_shift(skip_stats, count,
                                  params["bn1_g"][Cout:], params["bn1_b"][Cout:])

    # conv1 weight: PyTorch OIHW (Cout, 2*outDim, 3, 3) -> HWIO, split along input channels
    # (cat order is [up, skip]); banded per input and stacked along K.
    w1 = jnp.transpose(params["conv1_w"], (2, 3, 1, 0))
    w1_band = jnp.concatenate([band_conv3_weight(w1[:, :, :Cout, :], W2),
                               band_conv3_weight(w1[:, :, Cout:, :], W2)], axis=0)

    # 3) BN1 + conv1(3x3) + GELU, fused partial BN2 stats, concat-free.
    h1, h1_stats_raw = conv3x3_bn_gelu(
        [up, skip], [Cout, Cout], w1_band, [sc_up, sc_sk], [sh_up, sh_sk],
        params["conv1_b"], H=H2, W=W2, Cout=Cout,
        out_dtype=ACT_DTYPE, with_stats=True)
    h1_stats = h1_stats_raw.reshape(N, 2, W2, Cout).sum(axis=(0, 2))

    sc2, sh2 = bn_scale_shift(h1_stats, count, params["bn2_g"], params["bn2_b"])
    w2_band = band_conv3_weight(jnp.transpose(params["conv2_w"], (2, 3, 1, 0)), W2)

    # 4) BN2 + conv2(3x3) + GELU.
    h2, _ = conv3x3_bn_gelu(
        [h1], [Cout], w2_band, [sc2], [sh2], params["conv2_b"],
        H=H2, W=W2, Cout=Cout, out_dtype=jnp.float32, with_stats=False)

    return jnp.transpose(h2.reshape(N, H2, W2, Cout), (0, 3, 1, 2))   # NHWC -> NCHW


def init_params(key, inDim, outDim):
    ks = jax.random.split(key, 10)
    f32 = jnp.float32
    return {
        "up_w": 0.1 * jax.random.normal(ks[0], (inDim, outDim, 2, 2), f32),   # PyTorch
        "up_b": 0.1 * jax.random.normal(ks[1], (outDim,), f32),
        "bn1_g": 1.0 + 0.1 * jax.random.normal(ks[2], (2 * outDim,), f32),
        "bn1_b": 0.1 * jax.random.normal(ks[3], (2 * outDim,), f32),
        "conv1_w": 0.1 * jax.random.normal(ks[4], (outDim, 2 * outDim, 3, 3), f32),
        "conv1_b": 0.1 * jax.random.normal(ks[5], (outDim,), f32),
        "bn2_g": 1.0 + 0.05 * jax.random.normal(ks[6], (outDim,), f32),
        "bn2_b": 0.05 * jax.random.normal(ks[7], (outDim,), f32),
        "conv2_w": 0.1 * jax.random.normal(ks[8], (outDim, outDim, 3, 3), f32),
        "conv2_b": 0.1 * jax.random.normal(ks[9], (outDim,), f32),
    }


# ----------------------------------------------------------------------------
# Pure-JAX (XLA) reference for a sanity check.
# ----------------------------------------------------------------------------
def _ref_bn_train(x_nchw, gamma, beta, eps=BN_EPS):
    mean = jnp.mean(x_nchw, axis=(0, 2, 3), keepdims=True)
    var = jnp.mean(jnp.square(x_nchw - mean), axis=(0, 2, 3), keepdims=True)
    return ((x_nchw - mean) * lax.rsqrt(var + eps) * gamma[None, :, None, None]
            + beta[None, :, None, None])


def _ref_conv3x3(x_nchw, w_oihw, b):
    y = lax.conv_general_dilated(x_nchw, w_oihw, (1, 1), ((1, 1), (1, 1)),
                                 dimension_numbers=("NCHW", "OIHW", "NCHW"))
    return y + b[None, :, None, None]


def up_block_reference(x_nchw, skip_nchw, params):
    up = jnp.einsum("nihw,iodq->nohdwq", x_nchw, params["up_w"])
    N, Co, H, _, W, _ = up.shape
    up = up.reshape(N, Co, 2 * H, 2 * W) + params["up_b"][None, :, None, None]
    h = jnp.concatenate([up, skip_nchw], axis=1)
    h = _ref_bn_train(h, params["bn1_g"], params["bn1_b"])
    h = _gelu_exact(_ref_conv3x3(h, params["conv1_w"], params["conv1_b"]))
    h = _ref_bn_train(h, params["bn2_g"], params["bn2_b"])
    return _gelu_exact(_ref_conv3x3(h, params["conv2_w"], params["conv2_b"]))


if __name__ == "__main__":
    inDim, outDim = 16, 8
    N, H, W = 2, 8, 8                 # upsampled spatial size: 16 x 16

    key = jax.random.PRNGKey(0)
    kx, ks, kp = jax.random.split(key, 3)
    x = jax.random.normal(kx, (N, inDim, H, W), jnp.float32)              # NCHW
    skip = jax.random.normal(ks, (N, outDim, 2 * H, 2 * W), jnp.float32)  # NCHW
    params = init_params(kp, inDim, outDim)

    fwd = jax.jit(up_block_forward)
    out = jax.block_until_ready(fwd(x, skip, params))

    assert out.shape == (N, outDim, 2 * H, 2 * W), out.shape
    assert bool(jnp.all(jnp.isfinite(out)))

    ref = up_block_reference(x, skip, params)
    err = float(jnp.max(jnp.abs(out - ref)))
    # bf16 MXU operands / bf16 intermediate activations (f32 accumulation, f32 BN stats)
    # -> loose tolerance vs the all-f32 reference.
    assert err < 0.15, f"max |err| = {err}"
    print("KERNEL_OK")
</pallas_src>

<mosaic_0001>
module attributes {stable_mosaic.version = 11 : i64} {
  func.func @_deconv_kernel(%arg0: i32, %arg1: memref<1x8x128xf32, #tpu.memory_space<vmem>>, %arg2: memref<128x256xbf16, #tpu.memory_space<vmem>>, %arg3: memref<1x256xf32, #tpu.memory_space<vmem>>, %arg4: memref<1x8x256xbf16, #tpu.memory_space<vmem>>, %arg5: memref<1x2x256xf32, #tpu.memory_space<vmem>>) attributes {dimension_semantics = [#tpu.dimension_semantics<parallel>], iteration_bounds = array<i64: 2>, scalar_prefetch = 0 : i64, scratch_operands = 0 : i64, tpu.core_type = #tpu.core_type<tc>, window_params = [{transform_indices = @transform_0, window_bounds = array<i64: 1, 8, 128>}, {pipeline_mode = #tpu.pipeline_mode<synchronous>, transform_indices = @transform_1, window_bounds = array<i64: 128, 256>}, {pipeline_mode = #tpu.pipeline_mode<synchronous>, transform_indices = @transform_2, window_bounds = array<i64: 1, 256>}, {transform_indices = @transform_3, window_bounds = array<i64: 1, 8, 256>}, {transform_indices = @transform_4, window_bounds = array<i64: 1, 2, 256>}]} {
    %c0 = arith.constant 0 : index
    %c0_0 = arith.constant 0 : index
    %c0_1 = arith.constant 0 : index
    %0 = vector.load %arg1[%c0, %c0_0, %c0_1] : memref<1x8x128xf32, #tpu.memory_space<vmem>>, vector<1x8x128xf32>
    %1 = vector.shape_cast %0 : vector<1x8x128xf32> to vector<8x128xf32>
    %2 = arith.truncf %1 : vector<8x128xf32> to vector<8x128xbf16>
    %c0_2 = arith.constant 0 : index
    %c0_3 = arith.constant 0 : index
    %3 = vector.load %arg2[%c0_2, %c0_3] : memref<128x256xbf16, #tpu.memory_space<vmem>>, vector<128x256xbf16>
    %cst = arith.constant dense<0.000000e+00> : vector<8x256xf32>
    %4 = tpu.matmul %2, %3, %cst {dimension_numbers = #tpu.dot_dimension_numbers<[1], [0], [0], [1], [0, 0, 1, 1], [], []>} : vector<8x128xbf16>, vector<128x256xbf16>, vector<8x256xf32> -> vector<8x256xf32>
    %c0_4 = arith.constant 0 : index
    %c0_5 = arith.constant 0 : index
    %5 = vector.load %arg3[%c0_4, %c0_5] : memref<1x256xf32, #tpu.memory_space<vmem>>, vector<1x256xf32>
    %6 = vector.broadcast %5 : vector<1x256xf32> to vector<8x256xf32>
    %7 = arith.addf %4, %6 : vector<8x256xf32>
    %8 = arith.truncf %7 : vector<8x256xf32> to vector<8x256xbf16>
    %c0_6 = arith.constant 0 : index
    %c0_7 = arith.constant 0 : index
    %c0_8 = arith.constant 0 : index
    %9 = vector.load %arg4[%c0_6, %c0_7, %c0_8] : memref<1x8x256xbf16, #tpu.memory_space<vmem>>, vector<1x8x256xbf16>
    %10 = vector.shape_cast %9 : vector<1x8x256xbf16> to vector<8x256xbf16>
    %11 = vector.shape_cast %8 : vector<8x256xbf16> to vector<1x8x256xbf16>
    tpu.vector_store %arg4[%c0_6, %c0_7, %c0_8], %11 {strides = array<i32>} : memref<1x8x256xbf16, #tpu.memory_space<vmem>>, vector<1x8x256xbf16>,
    %cst_9 = arith.constant dense<0.000000e+00> : vector<256xf32>
    %12 = vector.multi_reduction <add>, %7, %cst_9 [0] : vector<8x256xf32> to vector<256xf32>
    %13 = vector.shape_cast %12 : vector<256xf32> to vector<1x256xf32>
    %14 = arith.mulf %7, %7 : vector<8x256xf32>
    %cst_10 = arith.constant dense<0.000000e+00> : vector<256xf32>
    %15 = vector.multi_reduction <add>, %14, %cst_10 [0] : vector<8x256xf32> to vector<256xf32>
    %16 = vector.shape_cast %15 : vector<256xf32> to vector<1x256xf32>
    %17 = tpu.concatenate %13, %16 in 0 : vector<1x256xf32>, vector<1x256xf32> -> vector<2x256xf32>
    %c0_11 = arith.constant 0 : index
    %c0_12 = arith.constant 0 : index
    %c0_13 = arith.constant 0 : index
    %18 = vector.load %arg5[%c0_11, %c0_12, %c0_13] : memref<1x2x256xf32, #tpu.memory_space<vmem>>, vector<1x2x256xf32>
    %19 = vector.shape_cast %18 : vector<1x2x256xf32> to vector<2x256xf32>
    %20 = vector.shape_cast %17 : vector<2x256xf32> to vector<1x2x256xf32>
    tpu.vector_store %arg5[%c0_11, %c0_12, %c0_13], %20 {strides = array<i32>} : memref<1x2x256xf32, #tpu.memory_space<vmem>>, vector<1x2x256xf32>,
    return
  }
  func.func @transform_0(%arg0: i32) -> (i32, i32, i32) {
    %c0_i32 = arith.constant 0 : i32
    %c0_i32_0 = arith.constant 0 : i32
    %c0_i32_1 = arith.constant 0 : i32
    return %arg0, %c0_i32, %c0_i32_0 : i32, i32, i32
  }
  func.func @transform_1(%arg0: i32) -> (i32, i32) {
    %c0_i32 = arith.constant 0 : i32
    %c0_i32_0 = arith.constant 0 : i32
    %c0_i32_1 = arith.constant 0 : i32
    return %c0_i32, %c0_i32_0 : i32, i32
  }
  func.func @transform_2(%arg0: i32) -> (i32, i32) {
    %c0_i32 = arith.constant 0 : i32
    %c0_i32_0 = arith.constant 0 : i32
    %c0_i32_1 = arith.constant 0 : i32
    return %c0_i32, %c0_i32_0 : i32, i32
  }
  func.func @transform_3(%arg0: i32) -> (i32, i32, i32) {
    %c0_i32 = arith.constant 0 : i32
    %c0_i32_0 = arith.constant 0 : i32
    %c0_i32_1 = arith.constant 0 : i32
    return %arg0, %c0_i32, %c0_i32_0 : i32, i32, i32
  }
  func.func @transform_4(%arg0: i32) -> (i32, i32, i32) {
    %c0_i32 = arith.constant 0 : i32
    %c0_i32_0 = arith.constant 0 : i32
    %c0_i32_1 = arith.constant 0 : i32
    return %arg0, %c0_i32, %c0_i32_0 : i32, i32, i32
  }
}

module attributes {stable_mosaic.version = 11 : i64} {
  func.func @kernel(%arg0: i32, %arg1: memref<1x16x128xbf16, #tpu.memory_space<vmem>>, %arg2: memref<1x128xf32, #tpu.memory_space<vmem>>, %arg3: memref<1x128xf32, #tpu.memory_space<vmem>>, %arg4: memref<1x16x128xf32, #tpu.memory_space<vmem>>, %arg5: memref<1x128xf32, #tpu.memory_space<vmem>>, %arg6: memref<1x128xf32, #tpu.memory_space<vmem>>, %arg7: memref<864x128xbf16, #tpu.memory_space<vmem>>, %arg8: memref<1x128xf32, #tpu.memory_space<vmem>>, %arg9: memref<1x16x128xbf16, #tpu.memory_space<vmem>>, %arg10: memref<1x2x128xf32, #tpu.memory_space<vmem>>, %arg11: memref<16x864xf32, #tpu.memory_space<vmem>>) attributes {dimension_semantics = [#tpu.dimension_semantics<parallel>], iteration_bounds = array<i64: 2>, scalar_prefetch = 0 : i64, scratch_operands = 1 : i64, tpu.core_type = #tpu.core_type<tc>, window_params = [{transform_indices = @transform_0, window_bounds = array<i64: 1, 16, 128>}, {pipeline_mode = #tpu.pipeline_mode<synchronous>, transform_indices = @transform_1, window_bounds = array<i64: 1, 128>}, {pipeline_mode = #tpu.pipeline_mode<synchronous>, transform_indices = @transform_2, window_bounds = array<i64: 1, 128>}, {transform_indices = @transform_3, window_bounds = array<i64: 1, 16, 128>}, {pipeline_mode = #tpu.pipeline_mode<synchronous>, transform_indices = @transform_4, window_bounds = array<i64: 1, 128>}, {pipeline_mode = #tpu.pipeline_mode<synchronous>, transform_indices = @transform_5, window_bounds = array<i64: 1, 128>}, {pipeline_mode = #tpu.pipeline_mode<synchronous>, transform_indices = @transform_6, window_bounds = array<i64: 864, 128>}, {pipeline_mode = #tpu.pipeline_mode<synchronous>, transform_indices = @transform_7, window_bounds = array<i64: 1, 128>}, {transform_indices = @transform_8, window_bounds = array<i64: 1, 16, 128>}, {transform_indices = @transform_9, window_bounds = array<i64: 1, 2, 128>}]} {
    %cst = arith.constant 0.000000e+00 : f32
    %0 = vector.broadcast %cst : f32 to vector<16x864xf32>
    %c0 = arith.constant 0 : index
    %c0_0 = arith.constant 0 : index
    %1 = vector.load %arg11[%c0, %c0_0] : memref<16x864xf32, #tpu.memory_space<vmem>>, vector<16x864xf32>
    tpu.vector_store %arg11[%c0, %c0_0], %0 {strides = array<i32>} : memref<16x864xf32, #tpu.memory_space<vmem>>, vector<16x864xf32>,
    %c0_1 = arith.constant 0 : index
    %c0_2 = arith.constant 0 : index
    %c0_3 = arith.constant 0 : index
    %2 = vector.load %arg1[%c0_1, %c0_2, %c0_3] : memref<1x16x128xbf16, #tpu.memory_space<vmem>>, vector<1x16x128xbf16>
    %3 = vector.shape_cast %2 : vector<1x16x128xbf16> to vector<16x128xbf16>
    %4 = arith.extf %3 : vector<16x128xbf16> to vector<16x128xf32>
    %c0_4 = arith.constant 0 : index
    %c0_5 = arith.constant 0 : index
    %5 = vector.load %arg2[%c0_4, %c0_5] : memref<1x128xf32, #tpu.memory_space<vmem>>, vector<1x128xf32>
    %6 = vector.broadcast %5 : vector<1x128xf32> to vector<16x128xf32>
    %7 = arith.mulf %4, %6 : vector<16x128xf32>
    %c0_6 = arith.constant 0 : index
    %c0_7 = arith.constant 0 : index
    %8 = vector.load %arg3[%c0_6, %c0_7] : memref<1x128xf32, #tpu.memory_space<vmem>>, vector<1x128xf32>
    %9 = vector.broadcast %8 : vector<1x128xf32> to vector<16x128xf32>
    %10 = arith.addf %7, %9 : vector<16x128xf32>
    %11 = vector.extract_strided_slice %10 {offsets = [0, 0], sizes = [15, 128], strides = [1, 1]} : vector<16x128xf32> to vector<15x128xf32>
    %c1 = arith.constant 1 : index
    %c8 = arith.constant 8 : index
    %12 = vector.load %arg11[%c1, %c8] : memref<16x864xf32, #tpu.memory_space<vmem>>, vector<15x128xf32>
    tpu.vector_store %arg11[%c1, %c8], %11 {strides = array<i32>} : memref<16x864xf32, #tpu.memory_space<vmem>>, vector<15x128xf32>,
    %c0_8 = arith.constant 0 : index
    %c152 = arith.constant 152 : index
    %13 = vector.load %arg11[%c0_8, %c152] : memref<16x864xf32, #tpu.memory_space<vmem>>, vector<16x128xf32>
    tpu.vector_store %arg11[%c0_8, %c152], %10 {strides = array<i32>} : memref<16x864xf32, #tpu.memory_space<vmem>>, vector<16x128xf32>,
    %14 = vector.extract_strided_slice %10 {offsets = [1, 0], sizes = [15, 128], strides = [1, 1]} : vector<16x128xf32> to vector<15x128xf32>
    %c0_9 = arith.constant 0 : index
    %c296 = arith.constant 296 : index
    %15 = vector.load %arg11[%c0_9, %c296] : memref<16x864xf32, #tpu.memory_space<vmem>>, vector<15x128xf32>
    tpu.vector_store %arg11[%c0_9, %c296], %14 {strides = array<i32>} : memref<16x864xf32, #tpu.memory_space<vmem>>, vector<15x128xf32>,
    %c0_10 = arith.constant 0 : index
    %c0_11 = arith.constant 0 : index
    %c0_12 = arith.constant 0 : index
    %16 = vector.load %arg4[%c0_10, %c0_11, %c0_12] : memref<1x16x128xf32, #tpu.memory_space<vmem>>, vector<1x16x128xf32>
    %17 = vector.shape_cast %16 : vector<1x16x128xf32> to vector<16x128xf32>
    %c0_13 = arith.constant 0 : index
    %c0_14 = arith.constant 0 : index
    %18 = vector.load %arg5[%c0_13, %c0_14] : memref<1x128xf32, #tpu.memory_space<vmem>>, vector<1x128xf32>
    %19 = vector.broadcast %18 : vector<1x128xf32> to vector<16x128xf32>
    %20 = arith.mulf %17, %19 : vector<16x128xf32>
    %c0_15 = arith.constant 0 : index
    %c0_16 = arith.constant 0 : index
    %21 = vector.load %arg6[%c0_15, %c0_16] : memref<1x128xf32, #tpu.memory_space<vmem>>, vector<1x128xf32>
    %22 = vector.broadcast %21 : vector<1x128xf32> to vector<16x128xf32>
    %23 = arith.addf %20, %22 : vector<16x128xf32>
    %24 = vector.extract_strided_slice %23 {offsets = [0, 0], sizes = [15, 128], strides = [1, 1]} : vector<16x128xf32> to vector<15x128xf32>
    %c1_17 = arith.constant 1 : index
    %c440 = arith.constant 440 : index
    %25 = vector.load %arg11[%c1_17, %c440] : memref<16x864xf32, #tpu.memory_space<vmem>>, vector<15x128xf32>
    tpu.vector_store %arg11[%c1_17, %c440], %24 {strides = array<i32>} : memref<16x864xf32, #tpu.memory_space<vmem>>, vector<15x128xf32>,
    %c0_18 = arith.constant 0 : index
    %c584 = arith.constant 584 : index
    %26 = vector.load %arg11[%c0_18, %c584] : memref<16x864xf32, #tpu.memory_space<vmem>>, vector<16x128xf32>
    tpu.vector_store %arg11[%c0_18, %c584], %23 {strides = array<i32>} : memref<16x864xf32, #tpu.memory_space<vmem>>, vector<16x128xf32>,
    %27 = vector.extract_strided_slice %23 {offsets = [1, 0], sizes = [15, 128], strides = [1, 1]} : vector<16x128xf32> to vector<15x128xf32>
    %c0_19 = arith.constant 0 : index
    %c728 = arith.constant 728 : index
    %28 = vector.load %arg11[%c0_19, %c728] : memref<16x864xf32, #tpu.memory_space<vmem>>, vector<15x128xf32>
    tpu.vector_store %arg11[%c0_19, %c728], %27 {strides = array<i32>} : memref<16x864xf32, #tpu.memory_space<vmem>>, vector<15x128xf32>,
    %c0_20 = arith.constant 0 : index
    %c0_21 = arith.constant 0 : index
    %29 = vector.load %arg11[%c0_20, %c0_21] : memref<16x864xf32, #tpu.memory_space<vmem>>, vector<16x864xf32>
    %30 = arith.truncf %29 : vector<16x864xf32> to vector<16x864xbf16>
    %c0_22 = arith.constant 0 : index
    %c0_23 = arith.constant 0 : index
    %31 = vector.load %arg7[%c0_22, %c0_23] : memref<864x128xbf16, #tpu.memory_space<vmem>>, vector<864x128xbf16>
    %cst_24 = arith.constant dense<0.000000e+00> : vector<16x128xf32>
    %32 = tpu.matmul %30, %31, %cst_24 {dimension_numbers = #tpu.dot_dimension_numbers<[1], [0], [0], [1], [0, 0, 1, 1], [], []>} : vector<16x864xbf16>, vector<864x128xbf16>, vector<16x128xf32> -> vector<16x128xf32>
    %c0_25 = arith.constant 0 : index
    %c0_26 = arith.constant 0 : index
    %33 = vector.load %arg8[%c0_25, %c0_26] : memref<1x128xf32, #tpu.memory_space<vmem>>, vector<1x128xf32>
    %34 = vector.broadcast %33 : vector<1x128xf32> to vector<16x128xf32>
    %35 = arith.addf %32, %34 : vector<16x128xf32>
    %cst_27 = arith.constant 5.000000e-01 : f32
    %36 = vector.broadcast %cst_27 : f32 to vector<16x128xf32>
    %37 = arith.mulf %36, %35 : vector<16x128xf32>
    %cst_28 = arith.constant 0.707106769 : f32
    %38 = vector.broadcast %cst_28 : f32 to vector<16x128xf32>
    %39 = arith.mulf %35, %38 : vector<16x128xf32>
    %40 = math.erf %39 : vector<16x128xf32>
    %cst_29 = arith.constant 1.000000e+00 : f32
    %41 = vector.broadcast %cst_29 : f32 to vector<16x128xf32>
    %42 = arith.addf %41, %40 : vector<16x128xf32>
    %43 = arith.mulf %37, %42 : vector<16x128xf32>
    %cst_30 = arith.constant dense<0.000000e+00> : vector<128xf32>
    %44 = vector.multi_reduction <add>, %43, %cst_30 [0] : vector<16x128xf32> to vector<128xf32>
    %45 = vector.shape_cast %44 : vector<128xf32> to vector<1x128xf32>
    %46 = arith.mulf %43, %43 : vector<16x128xf32>
    %cst_31 = arith.constant dense<0.000000e+00> : vector<128xf32>
    %47 = vector.multi_reduction <add>, %46, %cst_31 [0] : vector<16x128xf32> to vector<128xf32>
    %48 = vector.shape_cast %47 : vector<128xf32> to vector<1x128xf32>
    %49 = tpu.concatenate %45, %48 in 0 : vector<1x128xf32>, vector<1x128xf32> -> vector<2x128xf32>
    %c0_32 = arith.constant 0 : index
    %c0_33 = arith.constant 0 : index
    %c0_34 = arith.constant 0 : index
    %50 = vector.load %arg10[%c0_32, %c0_33, %c0_34] : memref<1x2x128xf32, #tpu.memory_space<vmem>>, vector<1x2x128xf32>
    %51 = vector.shape_cast %50 : vector<1x2x128xf32> to vector<2x128xf32>
    %52 = vector.shape_cast %49 : vector<2x128xf32> to vector<1x2x128xf32>
    tpu.vector_store %arg10[%c0_32, %c0_33, %c0_34], %52 {strides = array<i32>} : memref<1x2x128xf32, #tpu.memory_space<vmem>>, vector<1x2x128xf32>,
    %53 = arith.truncf %43 : vector<16x128xf32> to vector<16x128xbf16>
    %c0_35 = arith.constant 0 : index
    %c0_36 = arith.constant 0 : index
    %c0_37 = arith.constant 0 : index
    %54 = vector.load %arg9[%c0_35, %c0_36, %c0_37] : memref<1x16x128xbf16, #tpu.memory_space<vmem>>, vector<1x16x128xbf16>
    %55 = vector.shape_cast %54 : vector<1x16x128xbf16> to vector<16x128xbf16>
    %56 = vector.shape_cast %53 : vector<16x128xbf16> to vector<1x16x128xbf16>
    tpu.vector_store %arg9[%c0_35, %c0_36, %c0_37], %56 {strides = array<i32>} : memref<1x16x128xbf16, #tpu.memory_space<vmem>>, vector<1x16x128xbf16>,
    return
  }
  func.func @transform_0(%arg0: i32) -> (i32, i32, i32) {
    %c0_i32 = arith.constant 0 : i32
    %c0_i32_0 = arith.constant 0 : i32
    %c0_i32_1 = arith.constant 0 : i32
    return %arg0, %c0_i32, %c0_i32_0 : i32, i32, i32
  }
  func.func @transform_1(%arg0: i32) -> (i32, i32) {
    %c0_i32 = arith.constant 0 : i32
    %c0_i32_0 = arith.constant 0 : i32
    %c0_i32_1 = arith.constant 0 : i32
    return %c0_i32, %c0_i32_0 : i32, i32
  }
  func.func @transform_2(%arg0: i32) -> (i32, i32) {
    %c0_i32 = arith.constant 0 : i32
    %c0_i32_0 = arith.constant 0 : i32
    %c0_i32_1 = arith.constant 0 : i32
    return %c0_i32, %c0_i32_0 : i32, i32
  }
  func.func @transform_3(%arg0: i32) -> (i32, i32, i32) {
    %c0_i32 = arith.constant 0 : i32
    %c0_i32_0 = arith.constant 0 : i32
    %c0_i32_1 = arith.constant 0 : i32
    return %arg0, %c0_i32, %c0_i32_0 : i32, i32, i32
  }
  func.func @transform_4(%arg0: i32) -> (i32, i32) {
    %c0_i32 = arith.constant 0 : i32
    %c0_i32_0 = arith.constant 0 : i32
    %c0_i32_1 = arith.constant 0 : i32
    return %c0_i32, %c0_i32_0 : i32, i32
  }
  func.func @transform_5(%arg0: i32) -> (i32, i32) {
    %c0_i32 = arith.constant 0 : i32
    %c0_i32_0 = arith.constant 0 : i32
    %c0_i32_1 = arith.constant 0 : i32
    return %c0_i32, %c0_i32_0 : i32, i32
  }
  func.func @transform_6(%arg0: i32) -> (i32, i32) {
    %c0_i32 = arith.constant 0 : i32
    %c0_i32_0 = arith.constant 0 : i32
    %c0_i32_1 = arith.constant 0 : i32
    return %c0_i32, %c0_i32_0 : i32, i32
  }
  func.func @transform_7(%arg0: i32) -> (i32, i32) {
    %c0_i32 = arith.constant 0 : i32
    %c0_i32_0 = arith.constant 0 : i32
    %c0_i32_1 = arith.constant 0 : i32
    return %c0_i32, %c0_i32_0 : i32, i32
  }
  func.func @transform_8(%arg0: i32) -> (i32, i32, i32) {
    %c0_i32 = arith.constant 0 : i32
    %c0_i32_0 = arith.constant 0 : i32
    %c0_i32_1 = arith.constant 0 : i32
    return %arg0, %c0_i32, %c0_i32_0 : i32, i32, i32
  }
  func.func @transform_9(%arg0: i32) -> (i32, i32, i32) {
    %c0_i32 = arith.constant 0 : i32
    %c0_i32_0 = arith.constant 0 : i32
    %c0_i32_1 = arith.constant 0 : i32
    return %arg0, %c0_i32, %c0_i32_0 : i32, i32, i32
  }
}

module attributes {stable_mosaic.version = 11 : i64} {
  func.func @kernel(%arg0: i32, %arg1: memref<1x16x128xbf16, #tpu.memory_space<vmem>>, %arg2: memref<1x128xf32, #tpu.memory_space<vmem>>, %arg3: memref<1x128xf32, #tpu.memory_space<vmem>>, %arg4: memref<432x128xbf16, #tpu.memory_space<vmem>>, %arg5: memref<1x128xf32, #tpu.memory_space<vmem>>, %arg6: memref<1x16x128xf32, #tpu.memory_space<vmem>>, %arg7: memref<16x432xf32, #tpu.memory_space<vmem>>) attributes {dimension_semantics = [#tpu.dimension_semantics<parallel>], iteration_bounds = array<i64: 2>, scalar_prefetch = 0 : i64, scratch_operands = 1 : i64, tpu.core_type = #tpu.core_type<tc>, window_params = [{transform_indices = @transform_0, window_bounds = array<i64: 1, 16, 128>}, {pipeline_mode = #tpu.pipeline_mode<synchronous>, transform_indices = @transform_1, window_bounds = array<i64: 1, 128>}, {pipeline_mode = #tpu.pipeline_mode<synchronous>, transform_indices = @transform_2, window_bounds = array<i64: 1, 128>}, {pipeline_mode = #tpu.pipeline_mode<synchronous>, transform_indices = @transform_3, window_bounds = array<i64: 432, 128>}, {pipeline_mode = #tpu.pipeline_mode<synchronous>, transform_indices = @transform_4, window_bounds = array<i64: 1, 128>}, {transform_indices = @transform_5, window_bounds = array<i64: 1, 16, 128>}]} {
    %cst = arith.constant 0.000000e+00 : f32
    %0 = vector.broadcast %cst : f32 to vector<16x432xf32>
    %c0 = arith.constant 0 : index
    %c0_0 = arith.constant 0 : index
    %1 = vector.load %arg7[%c0, %c0_0] : memref<16x432xf32, #tpu.memory_space<vmem>>, vector<16x432xf32>
    tpu.vector_store %arg7[%c0, %c0_0], %0 {strides = array<i32>} : memref<16x432xf32, #tpu.memory_space<vmem>>, vector<16x432xf32>,
    %c0_1 = arith.constant 0 : index
    %c0_2 = arith.constant 0 : index
    %c0_3 = arith.constant 0 : index
    %2 = vector.load %arg1[%c0_1, %c0_2, %c0_3] : memref<1x16x128xbf16, #tpu.memory_space<vmem>>, vector<1x16x128xbf16>
    %3 = vector.shape_cast %2 : vector<1x16x128xbf16> to vector<16x128xbf16>
    %4 = arith.extf %3 : vector<16x128xbf16> to vector<16x128xf32>
    %c0_4 = arith.constant 0 : index
    %c0_5 = arith.constant 0 : index
    %5 = vector.load %arg2[%c0_4, %c0_5] : memref<1x128xf32, #tpu.memory_space<vmem>>, vector<1x128xf32>
    %6 = vector.broadcast %5 : vector<1x128xf32> to vector<16x128xf32>
    %7 = arith.mulf %4, %6 : vector<16x128xf32>
    %c0_6 = arith.constant 0 : index
    %c0_7 = arith.constant 0 : index
    %8 = vector.load %arg3[%c0_6, %c0_7] : memref<1x128xf32, #tpu.memory_space<vmem>>, vector<1x128xf32>
    %9 = vector.broadcast %8 : vector<1x128xf32> to vector<16x128xf32>
    %10 = arith.addf %7, %9 : vector<16x128xf32>
    %11 = vector.extract_strided_slice %10 {offsets = [0, 0], sizes = [15, 128], strides = [1, 1]} : vector<16x128xf32> to vector<15x128xf32>
    %c1 = arith.constant 1 : index
    %c8 = arith.constant 8 : index
    %12 = vector.load %arg7[%c1, %c8] : memref<16x432xf32, #tpu.memory_space<vmem>>, vector<15x128xf32>
    tpu.vector_store %arg7[%c1, %c8], %11 {strides = array<i32>} : memref<16x432xf32, #tpu.memory_space<vmem>>, vector<15x128xf32>,
    %c0_8 = arith.constant 0 : index
    %c152 = arith.constant 152 : index
    %13 = vector.load %arg7[%c0_8, %c152] : memref<16x432xf32, #tpu.memory_space<vmem>>, vector<16x128xf32>
    tpu.vector_store %arg7[%c0_8, %c152], %10 {strides = array<i32>} : memref<16x432xf32, #tpu.memory_space<vmem>>, vector<16x128xf32>,
    %14 = vector.extract_strided_slice %10 {offsets = [1, 0], sizes = [15, 128], strides = [1, 1]} : vector<16x128xf32> to vector<15x128xf32>
    %c0_9 = arith.constant 0 : index
    %c296 = arith.constant 296 : index
    %15 = vector.load %arg7[%c0_9, %c296] : memref<16x432xf32, #tpu.memory_space<vmem>>, vector<15x128xf32>
    tpu.vector_store %arg7[%c0_9, %c296], %14 {strides = array<i32>} : memref<16x432xf32, #tpu.memory_space<vmem>>, vector<15x128xf32>,
    %c0_10 = arith.constant 0 : index
    %c0_11 = arith.constant 0 : index
    %16 = vector.load %arg7[%c0_10, %c0_11] : memref<16x432xf32, #tpu.memory_space<vmem>>, vector<16x432xf32>
    %17 = arith.truncf %16 : vector<16x432xf32> to vector<16x432xbf16>
    %c0_12 = arith.constant 0 : index
    %c0_13 = arith.constant 0 : index
    %18 = vector.load %arg4[%c0_12, %c0_13] : memref<432x128xbf16, #tpu.memory_space<vmem>>, vector<432x128xbf16>
    %cst_14 = arith.constant dense<0.000000e+00> : vector<16x128xf32>
    %19 = tpu.matmul %17, %18, %cst_14 {dimension_numbers = #tpu.dot_dimension_numbers<[1], [0], [0], [1], [0, 0, 1, 1], [], []>} : vector<16x432xbf16>, vector<432x128xbf16>, vector<16x128xf32> -> vector<16x128xf32>
    %c0_15 = arith.constant 0 : index
    %c0_16 = arith.constant 0 : index
    %20 = vector.load %arg5[%c0_15, %c0_16] : memref<1x128xf32, #tpu.memory_space<vmem>>, vector<1x128xf32>
    %21 = vector.broadcast %20 : vector<1x128xf32> to vector<16x128xf32>
    %22 = arith.addf %19, %21 : vector<16x128xf32>
    %cst_17 = arith.constant 5.000000e-01 : f32
    %23 = vector.broadcast %cst_17 : f32 to vector<16x128xf32>
    %24 = arith.mulf %23, %22 : vector<16x128xf32>
    %cst_18 = arith.constant 0.707106769 : f32
    %25 = vector.broadcast %cst_18 : f32 to vector<16x128xf32>
    %26 = arith.mulf %22, %25 : vector<16x128xf32>
    %27 = math.erf %26 : vector<16x128xf32>
    %cst_19 = arith.constant 1.000000e+00 : f32
    %28 = vector.broadcast %cst_19 : f32 to vector<16x128xf32>
    %29 = arith.addf %28, %27 : vector<16x128xf32>
    %30 = arith.mulf %24, %29 : vector<16x128xf32>
    %c0_20 = arith.constant 0 : index
    %c0_21 = arith.constant 0 : index
    %c0_22 = arith.constant 0 : index
    %31 = vector.load %arg6[%c0_20, %c0_21, %c0_22] : memref<1x16x128xf32, #tpu.memory_space<vmem>>, vector<1x16x128xf32>
    %32 = vector.shape_cast %31 : vector<1x16x128xf32> to vector<16x128xf32>
    %33 = vector.shape_cast %30 : vector<16x128xf32> to vector<1x16x128xf32>
    tpu.vector_store %arg6[%c0_20, %c0_21, %c0_22], %33 {strides = array<i32>} : memref<1x16x128xf32, #tpu.memory_space<vmem>>, vector<1x16x128xf32>,
    return
  }
  func.func @transform_0(%arg0: i32) -> (i32, i32, i32) {
    %c0_i32 = arith.constant 0 : i32
    %c0_i32_0 = arith.constant 0 : i32
    %c0_i32_1 = arith.constant 0 : i32
    return %arg0, %c0_i32, %c0_i32_0 : i32, i32, i32
  }
  func.func @transform_1(%arg0: i32) -> (i32, i32) {
    %c0_i32 = arith.constant 0 : i32
    %c0_i32_0 = arith.constant 0 : i32
    %c0_i32_1 = arith.constant 0 : i32
    return %c0_i32, %c0_i32_0 : i32, i32
  }
  func.func @transform_2(%arg0: i32) -> (i32, i32) {
    %c0_i32 = arith.constant 0 : i32
    %c0_i32_0 = arith.constant 0 : i32
    %c0_i32_1 = arith.constant 0 : i32
    return %c0_i32, %c0_i32_0 : i32, i32
  }
  func.func @transform_3(%arg0: i32) -> (i32, i32) {
    %c0_i32 = arith.constant 0 : i32
    %c0_i32_0 = arith.constant 0 : i32
    %c0_i32_1 = arith.constant 0 : i32
    return %c0_i32, %c0_i32_0 : i32, i32
  }
  func.func @transform_4(%arg0: i32) -> (i32, i32) {
    %c0_i32 = arith.constant 0 : i32
    %c0_i32_0 = arith.constant 0 : i32
    %c0_i32_1 = arith.constant 0 : i32
    return %c0_i32, %c0_i32_0 : i32, i32
  }
  func.func @transform_5(%arg0: i32) -> (i32, i32, i32) {
    %c0_i32 = arith.constant 0 : i32
    %c0_i32_0 = arith.constant 0 : i32
    %c0_i32_1 = arith.constant 0 : i32
    return %arg0, %c0_i32, %c0_i32_0 : i32, i32, i32
  }
}

</mosaic_0001>

<llo_original>
// kernel: tile.48
$region0: #{tile.48}
  #allocation0 [shape = 's32[1]{0}', space=sflag, size = 0x4, scoped, tag = 'scoped memory for tile.48']
  %s0 = inlined_call_operand.vmem [shape: f32[8], index: 0, kind: input, shape index: {}]
  %s1 = inlined_call_operand.vmem [shape: f32[32,8], index: 1, kind: output, shape index: {}]
  // Predicated region
  $region2: #{tile.48} parent=0 // pred_check
    _
  $region3: #{tile.48} parent=0 // pred_check_branch
    %3 = sbr.rel (0) target = $region5
  $region4: #{tile.48} parent=0 // pred_region
    _
  $region5: #{tile.48} parent=0 // pred_fallthru
    _
  %v4 = vld [vmem:[%s0] ss:$0 sm:$0xff]
  %5 = vst [vmem:[%s1] sm:$0xff] %v4
  %s6 = scalar_lea.vmem %s1, 8
  %7 = vst [vmem:[%s6] sm:$0xff] %v4
  %s8 = scalar_lea.vmem %s1, 16
  %9 = vst [vmem:[%s8] sm:$0xff] %v4
  %s10 = scalar_lea.vmem %s1, 24
  %11 = vst [vmem:[%s10] sm:$0xff] %v4

// kernel: tile.49
$region0: #{tile.49}
  %s0 = inlined_call_operand.vmem [shape: f32[32,8], index: 0, kind: input, shape index: {}]
  %s1 = inlined_call_operand.vmem [shape: f32[1,256], index: 1, kind: output, shape index: {}]
  $region1: #{tile.49} parent=0
    #allocation0 [shape = 'u8[8192]{0}', space=vmem, size = 0x2000, scoped, tag = 'scoped mem for output reshape']
    %s2 = smov 3
    %v3 = vld [vmem:[%s0] ss:$16 sm:%s2]
    %vm4 = vcmask 64512
    %5 = vst.msk [vmem:[#allocation0] ss:$8 sm:$0x3] %vm4, %v3
    %s6 = scalar_lea.vmem %s0, 15
    %s7 = smov 3
    %v8 = vld [vmem:[%s6] ss:$16 sm:%s7]
    %9 = vrot.lane.b32.xlu0 %v8, 120
    %v10 = vpop.permute.xlu0 %9
    %vm11 = vcmask 1048512
    %12 = vst.msk [vmem:[#allocation0] ss:$8 sm:$0x3] %vm11, %v10
    %s13 = scalar_lea.vmem %s0, 14
    %s14 = smov 3
    %v15 = vld [vmem:[%s13] ss:$16 sm:%s14]
    %16 = vrot.lane.b32.xlu0 %v15, 112
    %v17 = vpop.permute.xlu0 %16
    %vm18 = vcmask 982912
    %19 = vst.msk [vmem:[#allocation0] ss:$8 sm:$0x3] %vm18, %v17
    %s20 = scalar_lea.vmem %s0, 13
    %s21 = smov 3
    %v22 = vld [vmem:[%s20] ss:$16 sm:%s21]
    %23 = vrot.lane.b32.xlu0 %v22, 104
    %v24 = vpop.permute.xlu0 %23
    %vm25 = vcmask 917312
    %26 = vst.msk [vmem:[#allocation0] ss:$8 sm:$0x3] %vm25, %v24
    %s27 = scalar_lea.vmem %s0, 12
    %s28 = smov 3
    %v29 = vld [vmem:[%s27] ss:$16 sm:%s28]
    %30 = vrot.lane.b32.xlu0 %v29, 96
    %v31 = vpop.permute.xlu0 %30
    %vm32 = vcmask 851712
    %33 = vst.msk [vmem:[#allocation0] ss:$8 sm:$0x3] %vm32, %v31
    %s34 = scalar_lea.vmem %s0, 11
    %s35 = smov 3
    %v36 = vld [vmem:[%s34] ss:$16 sm:%s35]
    %37 = vrot.lane.b32.xlu0 %v36, 88
    %v38 = vpop.permute.xlu0 %37
    %vm39 = vcmask 786112
    %40 = vst.msk [vmem:[#allocation0] ss:$8 sm:$0x3] %vm39, %v38
    %s41 = scalar_lea.vmem %s0, 10
    %s42 = smov 3
    %v43 = vld [vmem:[%s41] ss:$16 sm:%s42]
    %44 = vrot.lane.b32.xlu0 %v43, 80
    %v45 = vpop.permute.xlu0 %44
    %vm46 = vcmask 720512
    %47 = vst.msk [vmem:[#allocation0] ss:$8 sm:$0x3] %vm46, %v45
    %s48 = scalar_lea.vmem %s0, 9
    %s49 = smov 3
    %v50 = vld [vmem:[%s48] ss:$16 sm:%s49]
    %51 = vrot.lane.b32.xlu0 %v50, 72
    %v52 = vpop.permute.xlu0 %51
    %vm53 = vcmask 654912
    %54 = vst.msk [vmem:[#allocation0] ss:$8 sm:$0x3] %vm53, %v52
    %s55 = scalar_lea.vmem %s0, 8
    %s56 = smov 3
    %v57 = vld [vmem:[%s55] ss:$16 sm:%s56]
    %58 = vrot.lane.b32.xlu0 %v57, 64
    %v59 = vpop.permute.xlu0 %58
    %vm60 = vcmask 589312
    %61 = vst.msk [vmem:[#allocation0] ss:$8 sm:$0x3] %vm60, %v59
    %s62 = scalar_lea.vmem %s0, 7
    %s63 = smov 3
    %v64 = vld [vmem:[%s62] ss:$16 sm:%s63]
    %65 = vrot.lane.b32.xlu0 %v64, 56
    %v66 = vpop.permute.xlu0 %65
    %vm67 = vcmask 523712
    %68 = vst.msk [vmem:[#allocation0] ss:$8 sm:$0x3] %vm67, %v66
    %s69 = scalar_lea.vmem %s0, 6
    %s70 = smov 3
    %v71 = vld [vmem:[%s69] ss:$16 sm:%s70]
    %72 = vrot.lane.b32.xlu0 %v71, 48
    %v73 = vpop.permute.xlu0 %72
    %vm74 = vcmask 458112
    %75 = vst.msk [vmem:[#allocation0] ss:$8 sm:$0x3] %vm74, %v73
    %s76 = scalar_lea.vmem %s0, 5
    %s77 = smov 3
    %v78 = vld [vmem:[%s76] ss:$16 sm:%s77]
    %79 = vrot.lane.b32.xlu0 %v78, 40
    %v80 = vpop.permute.xlu0 %79
    %vm81 = vcmask 392512
    %82 = vst.msk [vmem:[#allocation0] ss:$8 sm:$0x3] %vm81, %v80
    %s83 = scalar_lea.vmem %s0, 4
    %s84 = smov 3
    %v85 = vld [vmem:[%s83] ss:$16 sm:%s84]
    %86 = vrot.lane.b32.xlu0 %v85, 32
    %v87 = vpop.permute.xlu0 %86
    %vm88 = vcmask 326912
    %89 = vst.msk [vmem:[#allocation0] ss:$8 sm:$0x3] %vm88, %v87
    %s90 = scalar_lea.vmem %s0, 3
    %s91 = smov 3
    %v92 = vld [vmem:[%s90] ss:$16 sm:%s91]
    %93 = vrot.lane.b32.xlu0 %v92, 24
    %v94 = vpop.permute.xlu0 %93
    %vm95 = vcmask 261312
    %96 = vst.msk [vmem:[#allocation0] ss:$8 sm:$0x3] %vm95, %v94
    %s97 = scalar_lea.vmem %s0, 2
    %s98 = smov 3
    %v99 = vld [vmem:[%s97] ss:$16 sm:%s98]
    %100 = vrot.lane.b32.xlu0 %v99, 16
    %v101 = vpop.permute.xlu0 %100
    %vm102 = vcmask 195712
    %103 = vst.msk [vmem:[#allocation0] ss:$8 sm:$0x3] %vm102, %v101
    %s104 = scalar_lea.vmem %s0, 1
    %s105 = smov 3
    %v106 = vld [vmem:[%s104] ss:$16 sm:%s105]
    %107 = vrot.lane.b32.xlu0 %v106, 8
    %v108 = vpop.permute.xlu0 %107
    %vm109 = vcmask 130112
    %110 = vst.msk [vmem:[#allocation0] ss:$8 sm:$0x3] %vm109, %v108
    %s112 = sshllo.u32 0, 1
    %v114 = vld [vmem:[#allocation0] sm:%s112]
    %s115 = sshllo.u32 0, 1
    %116 = vst [vmem:[%s1] sm:%s115] %v114
    %s117 = scalar_lea.vmem [#allocation0], 8
    %v118 = vld [vmem:[%s117] sm:%s112]
    %s119 = sshllo.u32 0, 1
    %s120 = scalar_lea.vmem %s1, 1
    %121 = vst [vmem:[%s120] sm:%s119] %v118

// kernel: up_block_forward.3
$region0: #{up_block_forward.3}
  #allocation0 [shape = 'u32[]', space=smem, size = 0x4, offset = 0x4, fixed_abs, tag = 'smem constant byte address 0x4 - core index']
  #allocation1 [shape = 'u32[144,128]{1,0:T(1,128)}', space=vmem, size = 0x12000, scoped, tag = 'internal scratch']
  %s0 = inlined_call_operand.vmem [shape: f32[2,8,128], index: 0, kind: input, shape index: {}]
  %s1 = inlined_call_operand.vmem [shape: bf16[128,256], index: 1, kind: input, shape index: {}]
  %s2 = inlined_call_operand.vmem [shape: f32[1,256], index: 2, kind: input, shape index: {}]
  %s3 = inlined_call_operand.vmem [shape: bf16[2,8,256], index: 3, kind: output, shape index: {0}]
  %s4 = inlined_call_operand.vmem [shape: f32[2,2,256], index: 4, kind: output, shape index: {1}]
  %5 = xla_tuple %s3, %s4
  %s6 = sld [smem:[#allocation0]]
  $region53: #{up_block_forward.3} parent=0
    _
  %s8 = ssub.s32 1, %s6
  %s9 = scalar_select 0, %s8, %s6
  loop: start=0, step=1, limit=4
  $region2: #{up_block_forward.3} parent=0 // loop_pre_header
    _
  $region3: #{up_block_forward.3} parent=0 // loop_header
    %s11 = sphi 0, %s15
    %p12 = scmp.ge.s32.totalorder %s11, 4
    %s21 = sphi 0, %s23
    %s24 = sphi 0, %s21
    %s25 = sphi 0, %s24
    %s41 = sphi 0, %s25
    %s45 = sphi 0, %s45
    %s47 = sphi 0, %s45
    %s48 = sphi 0, %s47
    %s62 = sphi 0, %s48
    %s66 = sphi 0, %s66
    %s68 = sphi 0, %s66
    %s69 = sphi 0, %s68
    %s83 = sphi 0, %s69
    %s89 = sphi 0, %s91
    %s92 = sphi 0, %s89
    %s93 = sphi 0, %s92
    %s109 = sphi 0, %s93
    %s115 = sphi 0, %s117
    %s118 = sphi 0, %s115
    %s119 = sphi 0, %s118
    %s135 = sphi 0, %s119
  $region4: #{up_block_forward.3} parent=0 // loop_header_branch
    %14 = sbr.rel (%p12) target = $region8
  $region5: #{up_block_forward.3} parent=0 // loop_body
    %s16 = ssub.s32 %s11, 1
    %s17 = ssub.s32 %s11, 2
    %s18 = sadd.s32 %s11, 1
    %s19 = ssub.s32 %s11, %s18
    %p20 = scmp.eq.s32.totalorder %s19, 0
    %s22 = sadd.s32 %s21, 1
    %s23 = scalar_select %p20, %s21, %s22
    %p26 = pneg %p20
    %p27 = scmp.eq.s32.totalorder %s11, 1
    %p28 = por %p26, %p27
    %p29 = scmp.ne.s32.totalorder %s21, %s24
    %p30 = scmp.eq.s32.totalorder %s11, 0
    %p31 = por %p29, %p30
    %p32 = scmp.ne.s32.totalorder %s21, %s24
    %p33 = scmp.eq.s32.totalorder %s16, 1
    %p34 = por %p32, %p33
    %p35 = scmp.ne.s32.totalorder %s24, %s25
    %p36 = scmp.eq.s32.totalorder %s16, 0
    %p37 = por %p35, %p36
    %p38 = scmp.ne.s32.totalorder %s24, %s25
    %p39 = scmp.eq.s32.totalorder %s17, 1
    %p40 = por %p38, %p39
    %p42 = scmp.ne.s32.totalorder %s25, %s41
    %p43 = scmp.eq.s32.totalorder %s17, 0
    %p44 = por %p42, %p43
    %s46 = sadd.s32 %s45, 1
    %p49 = scmp.eq.s32.totalorder %s11, 1
    %p50 = scmp.ne.s32.totalorder %s45, %s47
    %p51 = scmp.eq.s32.totalorder %s11, 0
    %p52 = por %p50, %p51
    %p53 = scmp.ne.s32.totalorder %s45, %s47
    %p54 = scmp.eq.s32.totalorder %s16, 1
    %p55 = por %p53, %p54
    %p56 = scmp.ne.s32.totalorder %s47, %s48
    %p57 = scmp.eq.s32.totalorder %s16, 0
    %p58 = por %p56, %p57
    %p59 = scmp.ne.s32.totalorder %s47, %s48
    %p60 = scmp.eq.s32.totalorder %s17, 1
    %p61 = por %p59, %p60
    %p63 = scmp.ne.s32.totalorder %s48, %s62
    %p64 = scmp.eq.s32.totalorder %s17, 0
    %p65 = por %p63, %p64
    %s67 = sadd.s32 %s66, 1
    %p70 = scmp.eq.s32.totalorder %s11, 1
    %p71 = scmp.ne.s32.totalorder %s66, %s68
    %p72 = scmp.eq.s32.totalorder %s11, 0
    %p73 = por %p71, %p72
    %p74 = scmp.ne.s32.totalorder %s66, %s68
    %p75 = scmp.eq.s32.totalorder %s16, 1
    %p76 = por %p74, %p75
    %p77 = scmp.ne.s32.totalorder %s68, %s69
    %p78 = scmp.eq.s32.totalorder %s16, 0
    %p79 = por %p77, %p78
    %p80 = scmp.ne.s32.totalorder %s68, %s69
    %p81 = scmp.eq.s32.totalorder %s17, 1
    %p82 = por %p80, %p81
    %p84 = scmp.ne.s32.totalorder %s69, %s83
    %p85 = scmp.eq.s32.totalorder %s17, 0
    %p86 = por %p84, %p85
    %s87 = ssub.s32 %s11, %s18
    %p88 = scmp.eq.s32.totalorder %s87, 0
    %s90 = sadd.s32 %s89, 1
    %s91 = scalar_select %p88, %s89, %s90
    %p94 = pneg %p88
    %p95 = scmp.eq.s32.totalorder %s11, 1
    %p96 = por %p94, %p95
    %p97 = scmp.ne.s32.totalorder %s89, %s92
    %p98 = scmp.eq.s32.totalorder %s11, 0
    %p99 = por %p97, %p98
    %p100 = scmp.ne.s32.totalorder %s89, %s92
    %p101 = scmp.eq.s32.totalorder %s16, 1
    %p102 = por %p100, %p101
    %p103 = scmp.ne.s32.totalorder %s92, %s93
    %p104 = scmp.eq.s32.totalorder %s16, 0
    %p105 = por %p103, %p104
    %p106 = scmp.ne.s32.totalorder %s92, %s93
    %p107 = scmp.eq.s32.totalorder %s17, 1
    %p108 = por %p106, %p107
    %p110 = scmp.ne.s32.totalorder %s93, %s109
    %p111 = scmp.eq.s32.totalorder %s17, 0
    %p112 = por %p110, %p111
    %s113 = ssub.s32 %s11, %s18
    %p114 = scmp.eq.s32.totalorder %s113, 0
    %s116 = sadd.s32 %s115, 1
    %s117 = scalar_select %p114, %s115, %s116
    %p120 = pneg %p114
    %p121 = scmp.eq.s32.totalorder %s11, 1
    %p122 = por %p120, %p121
    %p123 = scmp.ne.s32.totalorder %s115, %s118
    %p124 = scmp.eq.s32.totalorder %s11, 0
    %p125 = por %p123, %p124
    %p126 = scmp.ne.s32.totalorder %s115, %s118
    %p127 = scmp.eq.s32.totalorder %s16, 1
    %p128 = por %p126, %p127
    %p129 = scmp.ne.s32.totalorder %s118, %s119
    %p130 = scmp.eq.s32.totalorder %s16, 0
    %p131 = por %p129, %p130
    %p132 = scmp.ne.s32.totalorder %s118, %s119
    %p133 = scmp.eq.s32.totalorder %s17, 1
    %p134 = por %p132, %p133
    %p136 = scmp.ne.s32.totalorder %s119, %s135
    %p137 = scmp.eq.s32.totalorder %s17, 0
    %p138 = por %p136, %p137
    %p139 = scmp.le.s32.totalorder 1, %s11
    %p140 = scmp.lt.s32.totalorder %s11, 3
    %p141 = pnand %p139, %p140
    %p142 = pneg %p141
    // Predicated region
    $region9: #{up_block_forward.3} parent=5 // pred_check
      _
    $region10: #{up_block_forward.3} parent=5 // pred_check_branch
      %144 = sbr.rel (%p141) target = $region12
    $region11: #{up_block_forward.3} parent=5 // pred_region
      %s145 = ssub.s32 %s11, 1
      // Predicated region
      $region13: #{up_block_forward.3} parent=11 // pred_check
        %p146 = pneg %p58
      $region14: #{up_block_forward.3} parent=11 // pred_check_branch
        %148 = sbr.rel (%p146) target = $region16
      $region15: #{up_block_forward.3} parent=11 // pred_region
        _
      $region16: #{up_block_forward.3} parent=11 // pred_fallthru
        _
      // Predicated region
      $region17: #{up_block_forward.3} parent=11 // pred_check
        %p149 = pneg %p79
      $region18: #{up_block_forward.3} parent=11 // pred_check_branch
        %151 = sbr.rel (%p149) target = $region20
      $region19: #{up_block_forward.3} parent=11 // pred_region
        _
      $region20: #{up_block_forward.3} parent=11 // pred_fallthru
        _
    $region12: #{up_block_forward.3} parent=5 // pred_fallthru
      _
    %p152 = scmp.lt.s32.totalorder %s11, 2
    // Predicated region
    $region21: #{up_block_forward.3} parent=5 // pred_check
      %p153 = pneg %p152
    $region22: #{up_block_forward.3} parent=5 // pred_check_branch
      %155 = sbr.rel (%p153) target = $region24
    $region23: #{up_block_forward.3} parent=5 // pred_region
      // Predicated region
      $region25: #{up_block_forward.3} parent=23 // pred_check
        %p156 = pneg %p31
      $region26: #{up_block_forward.3} parent=23 // pred_check_branch
        %158 = sbr.rel (%p156) target = $region28
      $region27: #{up_block_forward.3} parent=23 // pred_region
        %p159 = scmp.lt.s32.totalorder %s11, 1
        %s160 = scalar_select %p159, %s11, 1
        %s161 = smul.addr %s160, 8
        %s162 = scalar_lea.vmem %s0, %s161
      $region28: #{up_block_forward.3} parent=23 // pred_fallthru
        _
    $region24: #{up_block_forward.3} parent=5 // pred_fallthru
      _
    %p163 = scmp.le.s32.totalorder 1, %s11
    %p164 = scmp.lt.s32.totalorder %s11, 3
    %p165 = pnand %p163, %p164
    %p166 = pneg %p165
    // Predicated region
    $region29: #{up_block_forward.3} parent=5 // pred_check
      _
    $region30: #{up_block_forward.3} parent=5 // pred_check_branch
      %168 = sbr.rel (%p165) target = $region32
    $region31: #{up_block_forward.3} parent=5 // pred_region
      %s169 = ssub.s32 %s11, 1
      %p170 = scmp.lt.s32.totalorder %s16, 1
      %s171 = scalar_select %p170, %s16, 1
      %s172 = smul.addr %s171, 8
      %s173 = scalar_lea.vmem %s0, %s172
      %p174 = pneg %p37
      %p175 = pneg %p34
      %p176 = pneg %p58
      %p177 = pneg %p55
      %p178 = pneg %p79
      %p179 = pneg %p76
      %p180 = pneg %p105
      %p181 = pneg %p102
      %p182 = scmp.lt.s32.totalorder %s16, 1
      %s183 = scalar_select %p182, %s16, 1
      %s184 = smul.addr %s183, 2
      %s185 = smul.addr %s184, 4
      %s186 = scalar_lea.vmem %s3, %s185
      %p187 = pneg %p131
      %p188 = pneg %p128
      %p189 = scmp.lt.s32.totalorder %s16, 1
      %s190 = scalar_select %p189, %s16, 1
      %s191 = smul.addr %s190, 2
      %s192 = smul.addr %s191, 2
      %s193 = scalar_lea.vmem %s4, %s192
      %p194 = scmp.lt.s32.totalorder %s16, 1
      %s195 = scalar_select %p194, %s16, 1
      %s196 = smul.addr %s195, 8
      %s197 = scalar_lea.vmem %s0, %s196
      %p198 = scmp.lt.s32.totalorder %s16, 1
      %s199 = scalar_select %p198, %s16, 1
      %s200 = smul.addr %s199, 2
      %s201 = smul.addr %s200, 4
      %s202 = scalar_lea.vmem %s3, %s201
      %p203 = scmp.lt.s32.totalorder %s16, 1
      %s204 = scalar_select %p203, %s16, 1
      %s205 = smul.addr %s204, 2
      %s206 = smul.addr %s205, 2
      %s207 = scalar_lea.vmem %s4, %s206
      %v209 = vld [vmem:[%s197] sm:$0xff]
      %v210 = vpack.c.bf16 %v209, %v209
      %v211 = vld [vmem:[%s1] sm:$0xff]
      %v212 = vld [vmem:[%s1 + $0x8] sm:$0xff]
      %v213 = vld [vmem:[%s1 + $0x10] sm:$0xff]
      %v214 = vld [vmem:[%s1 + $0x18] sm:$0xff]
      %v215 = vld [vmem:[%s1 + $0x20] sm:$0xff]
      %v216 = vld [vmem:[%s1 + $0x28] sm:$0xff]
      %v217 = vld [vmem:[%s1 + $0x30] sm:$0xff]
      %v218 = vld [vmem:[%s1 + $0x38] sm:$0xff]
      %v219 = vld [vmem:[%s1 + $0x40] sm:$0xff]
      %v220 = vld [vmem:[%s1 + $0x48] sm:$0xff]
      %v221 = vld [vmem:[%s1 + $0x50] sm:$0xff]
      %v222 = vld [vmem:[%s1 + $0x58] sm:$0xff]
      %v223 = vld [vmem:[%s1 + $0x60] sm:$0xff]
      %v224 = vld [vmem:[%s1 + $0x68] sm:$0xff]
      %v225 = vld [vmem:[%s1 + $0x70] sm:$0xff]
      %v226 = vld [vmem:[%s1 + $0x78] sm:$0xff]
      %v227 = vld [vmem:[%s2] sm:$0x3]
      %v229 = vlaneseq
      %v230 = vshrl.u32 %v229, 7
      %v231 = vsub.s32 0, %v230
      %v232 = vrot.slane %v227, %v231
      %v233 = vlaneseq
      %v234 = vshrl.u32 %v233, 7
      %v235 = vsub.s32 1, %v234
      %v236 = vrot.slane %v227, %v235
      %v255 = vunpack.c.l.b16 %v211
      %v256 = vunpack.c.h.b16 %v211
      %v257 = vunpack.c.l.b16 %v212
      %v258 = vunpack.c.h.b16 %v212
      %v259 = vunpack.c.l.b16 %v213
      %v260 = vunpack.c.h.b16 %v213
      %v261 = vunpack.c.l.b16 %v214
      %v262 = vunpack.c.h.b16 %v214
      %v263 = vunpack.c.l.b16 %v215
      %v264 = vunpack.c.h.b16 %v215
      %v265 = vunpack.c.l.b16 %v216
      %v266 = vunpack.c.h.b16 %v216
      %v267 = vunpack.c.l.b16 %v217
      %v268 = vunpack.c.h.b16 %v217
      %v269 = vunpack.c.l.b16 %v218
      %v270 = vunpack.c.h.b16 %v218
      %v271 = vunpack.c.l.b16 %v219
      %v272 = vunpack.c.h.b16 %v219
      %v273 = vunpack.c.l.b16 %v220
      %v274 = vunpack.c.h.b16 %v220
      %v275 = vunpack.c.l.b16 %v221
      %v276 = vunpack.c.h.b16 %v221
      %v277 = vunpack.c.l.b16 %v222
      %v278 = vunpack.c.h.b16 %v222
      %v279 = vunpack.c.l.b16 %v223
      %v280 = vunpack.c.h.b16 %v223
      %v281 = vunpack.c.l.b16 %v224
      %v282 = vunpack.c.h.b16 %v224
      %v283 = vunpack.c.l.b16 %v225
      %v284 = vunpack.c.h.b16 %v225
      %v285 = vunpack.c.l.b16 %v226
      %v286 = vunpack.c.h.b16 %v226
      %v287 = vpack.c.b16 %v257, %v255
      %v288 = vpack.c.b16 %v258, %v256
      %v289 = vpack.c.b16 %v261, %v259
      %v290 = vpack.c.b16 %v262, %v260
      %v291 = vpack.c.b16 %v265, %v263
      %v292 = vpack.c.b16 %v266, %v264
      %v293 = vpack.c.b16 %v269, %v267
      %v294 = vpack.c.b16 %v270, %v268
      %v295 = vpack.c.b16 %v273, %v271
      %v296 = vpack.c.b16 %v274, %v272
      %v297 = vpack.c.b16 %v277, %v275
      %v298 = vpack.c.b16 %v278, %v276
      %v299 = vpack.c.b16 %v281, %v279
      %v300 = vpack.c.b16 %v282, %v280
      %v301 = vpack.c.b16 %v285, %v283
      %v302 = vpack.c.b16 %v286, %v284
      %319 = vmatprep.subr.bf16.mxu0 %v288
      %320 = vmatpush1.bf16.msra.mxu0 %v287
      %321 = vmatprep.subr.bf16.mxu0 %v290
      %322 = vmatpush1.bf16.msra.mxu0 %v289
      %323 = vmatprep.subr.bf16.mxu0 %v292
      %324 = vmatpush1.bf16.msra.mxu0 %v291
      %325 = vmatprep.subr.bf16.mxu0 %v294
      %326 = vmatpush1.bf16.msra.mxu0 %v293
      %327 = vmatprep.subr.bf16.mxu0 %v296
      %328 = vmatpush1.bf16.msra.mxu0 %v295
      %329 = vmatprep.subr.bf16.mxu0 %v298
      %330 = vmatpush1.bf16.msra.mxu0 %v297
      %331 = vmatprep.subr.bf16.mxu0 %v300
      %332 = vmatpush1.bf16.msra.mxu0 %v299
      %333 = vmatprep.subr.bf16.mxu0 %v302
      %334 = vmatpush1.bf16.msra.mxu0 %v301
      %335 = vmatprep.subr.bf16.mxu0 0
      %336 = vmatpush1.bf16.msra.mxu0 0
      %337 = vmatprep.subr.bf16.mxu0 0
      %338 = vmatpush1.bf16.msra.mxu0 0
      %339 = vmatprep.subr.bf16.mxu0 0
      %340 = vmatpush1.bf16.msra.mxu0 0
      %341 = vmatprep.subr.bf16.mxu0 0
      %342 = vmatpush1.bf16.msra.mxu0 0
      %343 = vmatprep.subr.bf16.mxu0 0
      %344 = vmatpush1.bf16.msra.mxu0 0
      %345 = vmatprep.subr.bf16.mxu0 0
      %346 = vmatpush1.bf16.msra.mxu0 0
      %347 = vmatprep.subr.bf16.mxu0 0
      %348 = vmatpush1.bf16.msra.mxu0 0
      %349 = vmatprep.subr.bf16.mxu0 0
      %350 = vmatpush1.bf16.msra.mxu0 0
      %351 = vmatprep.mubr.bf16.mxu0 0
      %352 = vmatmul.mubr.bf16.gmra.mrb[0].mxu0 %v210
      %v353 = vpop.f32.mrb[0].mxu0
      %v354 = vadd.f32 %v232, %v353
      %v355 = vpop.f32.mrb[0].mxu0
      %v356 = vadd.f32 %v236, %v355
      %v357 = vpop.f32.mrb[0].mxu0
      %v358 = vpop.f32.mrb[0].mxu0
      %359 = vdwg.mxu0
      %v360 = vpack.c.bf16 %v354, %v354
      %v361 = vpack.c.bf16 %v356, %v356
      %v364 = vunpack.c.l.b16 %v360
      %v365 = vunpack.c.l.b16 %v361
      %v366 = vpack.c.b16 %v365, %v364
      %368 = vst [vmem:[%s202] sm:$0xff] %v366
      %v369 = vrot.slane %v354, 4
      %v370 = vadd.f32 %v354, %v369
      %v371 = vrot.slane %v370, 2
      %v372 = vadd.f32 %v370, %v371
      %v373 = vrot.slane %v372, 1
      %v374 = vadd.f32 %v372, %v373
      %v375 = vrot.slane %v356, 4
      %v376 = vadd.f32 %v356, %v375
      %v377 = vrot.slane %v376, 2
      %v378 = vadd.f32 %v376, %v377
      %v379 = vrot.slane %v378, 1
      %v380 = vadd.f32 %v378, %v379
      %v381 = vmul.f32 %v354, %v354
      %v382 = vmul.f32 %v356, %v356
      %v383 = vrot.slane %v381, 4
      %v384 = vadd.f32 %v381, %v383
      %v385 = vrot.slane %v384, 2
      %v386 = vadd.f32 %v384, %v385
      %v387 = vrot.slane %v386, 1
      %v388 = vadd.f32 %v386, %v387
      %v389 = vrot.slane %v382, 4
      %v390 = vadd.f32 %v382, %v389
      %v391 = vrot.slane %v390, 2
      %v392 = vadd.f32 %v390, %v391
      %v393 = vrot.slane %v392, 1
      %v394 = vadd.f32 %v392, %v393
      %vm395 = vcmask 1040384
      %v396 = vsel %vm395, %v374, %v388
      %v397 = vsel %vm395, %v380, %v394
      %v400 = vcombine.low %v396, %v397
      %v402 = vunpack.c.l.s4 1983009808
      %v403 = vunpack.c.0.s8 %v402
      %v404 = vlaneseq
      %v405 = vshrl.u32 %v404, 7
      %v406 = vsub.s32 %v403, %v405
      %v407 = vrot.slane %v400, %v406
      %409 = vst [vmem:[%s207] sm:$0xf] %v407
      %p410 = scmp.lt.s32.totalorder %s16, 1
      %s411 = scalar_select %p410, %s16, 1
      %s412 = smul.addr %s411, 2
      %s413 = smul.addr %s412, 4
      %s414 = scalar_lea.vmem %s3, %s413
      %p415 = scmp.lt.s32.totalorder %s16, 1
      %s416 = scalar_select %p415, %s16, 1
      %s417 = smul.addr %s416, 2
      %s418 = smul.addr %s417, 2
      %s419 = scalar_lea.vmem %s4, %s418
      // Predicated region
      $region33: #{up_block_forward.3} parent=31 // pred_check
        %p420 = pneg %p102
      $region34: #{up_block_forward.3} parent=31 // pred_check_branch
        %422 = sbr.rel (%p420) target = $region36
      $region35: #{up_block_forward.3} parent=31 // pred_region
        _
      $region36: #{up_block_forward.3} parent=31 // pred_fallthru
        _
      // Predicated region
      $region37: #{up_block_forward.3} parent=31 // pred_check
        %p423 = pneg %p128
      $region38: #{up_block_forward.3} parent=31 // pred_check_branch
        %425 = sbr.rel (%p423) target = $region40
      $region39: #{up_block_forward.3} parent=31 // pred_region
        _
      $region40: #{up_block_forward.3} parent=31 // pred_fallthru
        _
    $region32: #{up_block_forward.3} parent=5 // pred_fallthru
      _
    %p426 = scmp.le.s32.totalorder 2, %s11
    // Predicated region
    $region41: #{up_block_forward.3} parent=5 // pred_check
      %p427 = pneg %p426
    $region42: #{up_block_forward.3} parent=5 // pred_check_branch
      %429 = sbr.rel (%p427) target = $region44
    $region43: #{up_block_forward.3} parent=5 // pred_region
      %s430 = ssub.s32 %s11, 2
      // Predicated region
      $region45: #{up_block_forward.3} parent=43 // pred_check
        %p431 = pneg %p108
      $region46: #{up_block_forward.3} parent=43 // pred_check_branch
        %433 = sbr.rel (%p431) target = $region48
      $region47: #{up_block_forward.3} parent=43 // pred_region
        %p434 = scmp.lt.s32.totalorder %s17, 1
        %s435 = scalar_select %p434, %s17, 1
        %s436 = smul.addr %s435, 2
        %s437 = smul.addr %s436, 4
        %s438 = scalar_lea.vmem %s3, %s437
      $region48: #{up_block_forward.3} parent=43 // pred_fallthru
        _
      // Predicated region
      $region49: #{up_block_forward.3} parent=43 // pred_check
        %p439 = pneg %p134
      $region50: #{up_block_forward.3} parent=43 // pred_check_branch
        %441 = sbr.rel (%p439) target = $region52
      $region51: #{up_block_forward.3} parent=43 // pred_region
        %p442 = scmp.lt.s32.totalorder %s17, 1
        %s443 = scalar_select %p442, %s17, 1
        %s444 = smul.addr %s443, 2
        %s445 = smul.addr %s444, 2
        %s446 = scalar_lea.vmem %s4, %s445
      $region52: #{up_block_forward.3} parent=43 // pred_fallthru
        _
    $region44: #{up_block_forward.3} parent=5 // pred_fallthru
      _
  $region6: #{up_block_forward.3} parent=0 // loop_footer
    %s15 = sadd.s32 1, %s11
  $region7: #{up_block_forward.3} parent=0 // loop_footer_branch
    %10 = sbr.rel target = $region3
  $region8: #{up_block_forward.3} parent=0 // loop_exit
    _

// kernel: tile.53
$region0: #{tile.53}
  #allocation0 [shape = 's32[1]{0}', space=sflag, size = 0x4, scoped, tag = 'scoped memory for tile.53']
  %s0 = inlined_call_operand.vmem [shape: f32[8], index: 0, kind: input, shape index: {}]
  %s1 = inlined_call_operand.vmem [shape: f32[16,8], index: 1, kind: output, shape index: {}]
  // Predicated region
  $region2: #{tile.53} parent=0 // pred_check
    _
  $region3: #{tile.53} parent=0 // pred_check_branch
    %3 = sbr.rel (0) target = $region5
  $region4: #{tile.53} parent=0 // pred_region
    _
  $region5: #{tile.53} parent=0 // pred_fallthru
    _
  %v4 = vld [vmem:[%s0] ss:$0 sm:$0xff]
  %5 = vst [vmem:[%s1] sm:$0xff] %v4
  %s6 = scalar_lea.vmem %s1, 8
  %7 = vst [vmem:[%s6] sm:$0xff] %v4

// kernel: tile.54
$region0: #{tile.54}
  %s0 = inlined_call_operand.vmem [shape: f32[16,8], index: 0, kind: input, shape index: {}]
  %s1 = inlined_call_operand.vmem [shape: f32[1,128], index: 1, kind: output, shape index: {}]
  $region1: #{tile.54} parent=0
    #allocation0 [shape = 'u8[4096]{0}', space=vmem, size = 0x1000, scoped, tag = 'scoped mem for output reshape']
    %v2 = vld [vmem:[%s0] sm:$0x1]
    %vm3 = vcmask 64512
    %4 = vst.msk [vmem:[#allocation0] sm:$0x1] %vm3, %v2
    %s5 = scalar_lea.vmem %s0, 15
    %v6 = vld [vmem:[%s5] sm:$0x1]
    %7 = vrot.lane.b32.xlu0 %v6, 120
    %v8 = vpop.permute.xlu0 %7
    %vm9 = vcmask 1048512
    %10 = vst.msk [vmem:[#allocation0] sm:$0x1] %vm9, %v8
    %s11 = scalar_lea.vmem %s0, 14
    %v12 = vld [vmem:[%s11] sm:$0x1]
    %13 = vrot.lane.b32.xlu0 %v12, 112
    %v14 = vpop.permute.xlu0 %13
    %vm15 = vcmask 982912
    %16 = vst.msk [vmem:[#allocation0] sm:$0x1] %vm15, %v14
    %s17 = scalar_lea.vmem %s0, 13
    %v18 = vld [vmem:[%s17] sm:$0x1]
    %19 = vrot.lane.b32.xlu0 %v18, 104
    %v20 = vpop.permute.xlu0 %19
    %vm21 = vcmask 917312
    %22 = vst.msk [vmem:[#allocation0] sm:$0x1] %vm21, %v20
    %s23 = scalar_lea.vmem %s0, 12
    %v24 = vld [vmem:[%s23] sm:$0x1]
    %25 = vrot.lane.b32.xlu0 %v24, 96
    %v26 = vpop.permute.xlu0 %25
    %vm27 = vcmask 851712
    %28 = vst.msk [vmem:[#allocation0] sm:$0x1] %vm27, %v26
    %s29 = scalar_lea.vmem %s0, 11
    %v30 = vld [vmem:[%s29] sm:$0x1]
    %31 = vrot.lane.b32.xlu0 %v30, 88
    %v32 = vpop.permute.xlu0 %31
    %vm33 = vcmask 786112
    %34 = vst.msk [vmem:[#allocation0] sm:$0x1] %vm33, %v32
    %s35 = scalar_lea.vmem %s0, 10
    %v36 = vld [vmem:[%s35] sm:$0x1]
    %37 = vrot.lane.b32.xlu0 %v36, 80
    %v38 = vpop.permute.xlu0 %37
    %vm39 = vcmask 720512
    %40 = vst.msk [vmem:[#allocation0] sm:$0x1] %vm39, %v38
    %s41 = scalar_lea.vmem %s0, 9
    %v42 = vld [vmem:[%s41] sm:$0x1]
    %43 = vrot.lane.b32.xlu0 %v42, 72
    %v44 = vpop.permute.xlu0 %43
    %vm45 = vcmask 654912
    %46 = vst.msk [vmem:[#allocation0] sm:$0x1] %vm45, %v44
    %s47 = scalar_lea.vmem %s0, 8
    %v48 = vld [vmem:[%s47] sm:$0x1]
    %49 = vrot.lane.b32.xlu0 %v48, 64
    %v50 = vpop.permute.xlu0 %49
    %vm51 = vcmask 589312
    %52 = vst.msk [vmem:[#allocation0] sm:$0x1] %vm51, %v50
    %s53 = scalar_lea.vmem %s0, 7
    %v54 = vld [vmem:[%s53] sm:$0x1]
    %55 = vrot.lane.b32.xlu0 %v54, 56
    %v56 = vpop.permute.xlu0 %55
    %vm57 = vcmask 523712
    %58 = vst.msk [vmem:[#allocation0] sm:$0x1] %vm57, %v56
    %s59 = scalar_lea.vmem %s0, 6
    %v60 = vld [vmem:[%s59] sm:$0x1]
    %61 = vrot.lane.b32.xlu0 %v60, 48
    %v62 = vpop.permute.xlu0 %61
    %vm63 = vcmask 458112
    %64 = vst.msk [vmem:[#allocation0] sm:$0x1] %vm63, %v62
    %s65 = scalar_lea.vmem %s0, 5
    %v66 = vld [vmem:[%s65] sm:$0x1]
    %67 = vrot.lane.b32.xlu0 %v66, 40
    %v68 = vpop.permute.xlu0 %67
    %vm69 = vcmask 392512
    %70 = vst.msk [vmem:[#allocation0] sm:$0x1] %vm69, %v68
    %s71 = scalar_lea.vmem %s0, 4
    %v72 = vld [vmem:[%s71] sm:$0x1]
    %73 = vrot.lane.b32.xlu0 %v72, 32
    %v74 = vpop.permute.xlu0 %73
    %vm75 = vcmask 326912
    %76 = vst.msk [vmem:[#allocation0] sm:$0x1] %vm75, %v74
    %s77 = scalar_lea.vmem %s0, 3
    %v78 = vld [vmem:[%s77] sm:$0x1]
    %79 = vrot.lane.b32.xlu0 %v78, 24
    %v80 = vpop.permute.xlu0 %79
    %vm81 = vcmask 261312
    %82 = vst.msk [vmem:[#allocation0] sm:$0x1] %vm81, %v80
    %s83 = scalar_lea.vmem %s0, 2
    %v84 = vld [vmem:[%s83] sm:$0x1]
    %85 = vrot.lane.b32.xlu0 %v84, 16
    %v86 = vpop.permute.xlu0 %85
    %vm87 = vcmask 195712
    %88 = vst.msk [vmem:[#allocation0] sm:$0x1] %vm87, %v86
    %s89 = scalar_lea.vmem %s0, 1
    %v90 = vld [vmem:[%s89] sm:$0x1]
    %91 = vrot.lane.b32.xlu0 %v90, 8
    %v92 = vpop.permute.xlu0 %91
    %vm93 = vcmask 130112
    %94 = vst.msk [vmem:[#allocation0] sm:$0x1] %vm93, %v92
    %s96 = sshllo.u32 0, 1
    %v98 = vld [vmem:[#allocation0] sm:%s96]
    %s99 = sshllo.u32 0, 1
    %100 = vst [vmem:[%s1] sm:%s99] %v98

// kernel: up_block_forward.4
$region0: #{up_block_forward.4}
  #allocation0 [shape = 'u32[]', space=smem, size = 0x4, offset = 0x4, fixed_abs, tag = 'smem constant byte address 0x4 - core index']
  #allocation1 [shape = 'u32[144,128]{1,0:T(1,128)}', space=vmem, size = 0x12000, scoped, tag = 'internal scratch']
  #allocation2 [shape = 'f32[16,864]{1,0:T(8,128)}', space=vmem, size = 0xe000, scoped, tag = 'scratch operand']
  %s0 = inlined_call_operand.vmem [shape: bf16[2,16,128], index: 0, kind: input, shape index: {}]
  %s1 = inlined_call_operand.vmem [shape: f32[1,128], index: 1, kind: input, shape index: {}]
  %s2 = inlined_call_operand.vmem [shape: f32[1,128], index: 2, kind: input, shape index: {}]
  %s3 = inlined_call_operand.vmem [shape: f32[2,16,128], index: 3, kind: input, shape index: {}]
  %s4 = inlined_call_operand.vmem [shape: f32[1,128], index: 4, kind: input, shape index: {}]
  %s5 = inlined_call_operand.vmem [shape: f32[1,128], index: 5, kind: input, shape index: {}]
  %s6 = inlined_call_operand.vmem [shape: bf16[864,128], index: 6, kind: input, shape index: {}]
  %s7 = inlined_call_operand.vmem [shape: f32[1,128], index: 7, kind: input, shape index: {}]
  %s8 = inlined_call_operand.vmem [shape: bf16[2,16,128], index: 8, kind: output, shape index: {0}]
  %s9 = inlined_call_operand.vmem [shape: f32[2,2,128], index: 9, kind: output, shape index: {1}]
  %10 = xla_tuple %s8, %s9
  %s11 = sld [smem:[#allocation0]]
  $region73: #{up_block_forward.4} parent=0
    _
  %s13 = ssub.s32 1, %s11
  %s14 = scalar_select 0, %s13, %s11
  loop: start=0, step=1, limit=4
  $region2: #{up_block_forward.4} parent=0 // loop_pre_header
    _
  $region3: #{up_block_forward.4} parent=0 // loop_header
    %s16 = sphi 0, %s20
    %p17 = scmp.ge.s32.totalorder %s16, 4
    %s26 = sphi 0, %s28
    %s29 = sphi 0, %s26
    %s30 = sphi 0, %s29
    %s46 = sphi 0, %s30
    %s50 = sphi 0, %s50
    %s52 = sphi 0, %s50
    %s53 = sphi 0, %s52
    %s67 = sphi 0, %s53
    %s71 = sphi 0, %s71
    %s73 = sphi 0, %s71
    %s74 = sphi 0, %s73
    %s88 = sphi 0, %s74
    %s94 = sphi 0, %s96
    %s97 = sphi 0, %s94
    %s98 = sphi 0, %s97
    %s114 = sphi 0, %s98
    %s118 = sphi 0, %s118
    %s120 = sphi 0, %s118
    %s121 = sphi 0, %s120
    %s135 = sphi 0, %s121
    %s139 = sphi 0, %s139
    %s141 = sphi 0, %s139
    %s142 = sphi 0, %s141
    %s156 = sphi 0, %s142
    %s160 = sphi 0, %s160
    %s162 = sphi 0, %s160
    %s163 = sphi 0, %s162
    %s177 = sphi 0, %s163
    %s181 = sphi 0, %s181
    %s183 = sphi 0, %s181
    %s184 = sphi 0, %s183
    %s198 = sphi 0, %s184
    %s204 = sphi 0, %s206
    %s207 = sphi 0, %s204
    %s208 = sphi 0, %s207
    %s224 = sphi 0, %s208
    %s230 = sphi 0, %s232
    %s233 = sphi 0, %s230
    %s234 = sphi 0, %s233
    %s250 = sphi 0, %s234
  $region4: #{up_block_forward.4} parent=0 // loop_header_branch
    %19 = sbr.rel (%p17) target = $region8
  $region5: #{up_block_forward.4} parent=0 // loop_body
    %s21 = ssub.s32 %s16, 1
    %s22 = ssub.s32 %s16, 2
    %s23 = sadd.s32 %s16, 1
    %s24 = ssub.s32 %s16, %s23
    %p25 = scmp.eq.s32.totalorder %s24, 0
    %s27 = sadd.s32 %s26, 1
    %s28 = scalar_select %p25, %s26, %s27
    %p31 = pneg %p25
    %p32 = scmp.eq.s32.totalorder %s16, 1
    %p33 = por %p31, %p32
    %p34 = scmp.ne.s32.totalorder %s26, %s29
    %p35 = scmp.eq.s32.totalorder %s16, 0
    %p36 = por %p34, %p35
    %p37 = scmp.ne.s32.totalorder %s26, %s29
    %p38 = scmp.eq.s32.totalorder %s21, 1
    %p39 = por %p37, %p38
    %p40 = scmp.ne.s32.totalorder %s29, %s30
    %p41 = scmp.eq.s32.totalorder %s21, 0
    %p42 = por %p40, %p41
    %p43 = scmp.ne.s32.totalorder %s29, %s30
    %p44 = scmp.eq.s32.totalorder %s22, 1
    %p45 = por %p43, %p44
    %p47 = scmp.ne.s32.totalorder %s30, %s46
    %p48 = scmp.eq.s32.totalorder %s22, 0
    %p49 = por %p47, %p48
    %s51 = sadd.s32 %s50, 1
    %p54 = scmp.eq.s32.totalorder %s16, 1
    %p55 = scmp.ne.s32.totalorder %s50, %s52
    %p56 = scmp.eq.s32.totalorder %s16, 0
    %p57 = por %p55, %p56
    %p58 = scmp.ne.s32.totalorder %s50, %s52
    %p59 = scmp.eq.s32.totalorder %s21, 1
    %p60 = por %p58, %p59
    %p61 = scmp.ne.s32.totalorder %s52, %s53
    %p62 = scmp.eq.s32.totalorder %s21, 0
    %p63 = por %p61, %p62
    %p64 = scmp.ne.s32.totalorder %s52, %s53
    %p65 = scmp.eq.s32.totalorder %s22, 1
    %p66 = por %p64, %p65
    %p68 = scmp.ne.s32.totalorder %s53, %s67
    %p69 = scmp.eq.s32.totalorder %s22, 0
    %p70 = por %p68, %p69
    %s72 = sadd.s32 %s71, 1
    %p75 = scmp.eq.s32.totalorder %s16, 1
    %p76 = scmp.ne.s32.totalorder %s71, %s73
    %p77 = scmp.eq.s32.totalorder %s16, 0
    %p78 = por %p76, %p77
    %p79 = scmp.ne.s32.totalorder %s71, %s73
    %p80 = scmp.eq.s32.totalorder %s21, 1
    %p81 = por %p79, %p80
    %p82 = scmp.ne.s32.totalorder %s73, %s74
    %p83 = scmp.eq.s32.totalorder %s21, 0
    %p84 = por %p82, %p83
    %p85 = scmp.ne.s32.totalorder %s73, %s74
    %p86 = scmp.eq.s32.totalorder %s22, 1
    %p87 = por %p85, %p86
    %p89 = scmp.ne.s32.totalorder %s74, %s88
    %p90 = scmp.eq.s32.totalorder %s22, 0
    %p91 = por %p89, %p90
    %s92 = ssub.s32 %s16, %s23
    %p93 = scmp.eq.s32.totalorder %s92, 0
    %s95 = sadd.s32 %s94, 1
    %s96 = scalar_select %p93, %s94, %s95
    %p99 = pneg %p93
    %p100 = scmp.eq.s32.totalorder %s16, 1
    %p101 = por %p99, %p100
    %p102 = scmp.ne.s32.totalorder %s94, %s97
    %p103 = scmp.eq.s32.totalorder %s16, 0
    %p104 = por %p102, %p103
    %p105 = scmp.ne.s32.totalorder %s94, %s97
    %p106 = scmp.eq.s32.totalorder %s21, 1
    %p107 = por %p105, %p106
    %p108 = scmp.ne.s32.totalorder %s97, %s98
    %p109 = scmp.eq.s32.totalorder %s21, 0
    %p110 = por %p108, %p109
    %p111 = scmp.ne.s32.totalorder %s97, %s98
    %p112 = scmp.eq.s32.totalorder %s22, 1
    %p113 = por %p111, %p112
    %p115 = scmp.ne.s32.totalorder %s98, %s114
    %p116 = scmp.eq.s32.totalorder %s22, 0
    %p117 = por %p115, %p116
    %s119 = sadd.s32 %s118, 1
    %p122 = scmp.eq.s32.totalorder %s16, 1
    %p123 = scmp.ne.s32.totalorder %s118, %s120
    %p124 = scmp.eq.s32.totalorder %s16, 0
    %p125 = por %p123, %p124
    %p126 = scmp.ne.s32.totalorder %s118, %s120
    %p127 = scmp.eq.s32.totalorder %s21, 1
    %p128 = por %p126, %p127
    %p129 = scmp.ne.s32.totalorder %s120, %s121
    %p130 = scmp.eq.s32.totalorder %s21, 0
    %p131 = por %p129, %p130
    %p132 = scmp.ne.s32.totalorder %s120, %s121
    %p133 = scmp.eq.s32.totalorder %s22, 1
    %p134 = por %p132, %p133
    %p136 = scmp.ne.s32.totalorder %s121, %s135
    %p137 = scmp.eq.s32.totalorder %s22, 0
    %p138 = por %p136, %p137
    %s140 = sadd.s32 %s139, 1
    %p143 = scmp.eq.s32.totalorder %s16, 1
    %p144 = scmp.ne.s32.totalorder %s139, %s141
    %p145 = scmp.eq.s32.totalorder %s16, 0
    %p146 = por %p144, %p145
    %p147 = scmp.ne.s32.totalorder %s139, %s141
    %p148 = scmp.eq.s32.totalorder %s21, 1
    %p149 = por %p147, %p148
    %p150 = scmp.ne.s32.totalorder %s141, %s142
    %p151 = scmp.eq.s32.totalorder %s21, 0
    %p152 = por %p150, %p151
    %p153 = scmp.ne.s32.totalorder %s141, %s142
    %p154 = scmp.eq.s32.totalorder %s22, 1
    %p155 = por %p153, %p154
    %p157 = scmp.ne.s32.totalorder %s142, %s156
    %p158 = scmp.eq.s32.totalorder %s22, 0
    %p159 = por %p157, %p158
    %s161 = sadd.s32 %s160, 1
    %p164 = scmp.eq.s32.totalorder %s16, 1
    %p165 = scmp.ne.s32.totalorder %s160, %s162
    %p166 = scmp.eq.s32.totalorder %s16, 0
    %p167 = por %p165, %p166
    %p168 = scmp.ne.s32.totalorder %s160, %s162
    %p169 = scmp.eq.s32.totalorder %s21, 1
    %p170 = por %p168, %p169
    %p171 = scmp.ne.s32.totalorder %s162, %s163
    %p172 = scmp.eq.s32.totalorder %s21, 0
    %p173 = por %p171, %p172
    %p174 = scmp.ne.s32.totalorder %s162, %s163
    %p175 = scmp.eq.s32.totalorder %s22, 1
    %p176 = por %p174, %p175
    %p178 = scmp.ne.s32.totalorder %s163, %s177
    %p179 = scmp.eq.s32.totalorder %s22, 0
    %p180 = por %p178, %p179
    %s182 = sadd.s32 %s181, 1
    %p185 = scmp.eq.s32.totalorder %s16, 1
    %p186 = scmp.ne.s32.totalorder %s181, %s183
    %p187 = scmp.eq.s32.totalorder %s16, 0
    %p188 = por %p186, %p187
    %p189 = scmp.ne.s32.totalorder %s181, %s183
    %p190 = scmp.eq.s32.totalorder %s21, 1
    %p191 = por %p189, %p190
    %p192 = scmp.ne.s32.totalorder %s183, %s184
    %p193 = scmp.eq.s32.totalorder %s21, 0
    %p194 = por %p192, %p193
    %p195 = scmp.ne.s32.totalorder %s183, %s184
    %p196 = scmp.eq.s32.totalorder %s22, 1
    %p197 = por %p195, %p196
    %p199 = scmp.ne.s32.totalorder %s184, %s198
    %p200 = scmp.eq.s32.totalorder %s22, 0
    %p201 = por %p199, %p200
    %s202 = ssub.s32 %s16, %s23
    %p203 = scmp.eq.s32.totalorder %s202, 0
    %s205 = sadd.s32 %s204, 1
    %s206 = scalar_select %p203, %s204, %s205
    %p209 = pneg %p203
    %p210 = scmp.eq.s32.totalorder %s16, 1
    %p211 = por %p209, %p210
    %p212 = scmp.ne.s32.totalorder %s204, %s207
    %p213 = scmp.eq.s32.totalorder %s16, 0
    %p214 = por %p212, %p213
    %p215 = scmp.ne.s32.totalorder %s204, %s207
    %p216 = scmp.eq.s32.totalorder %s21, 1
    %p217 = por %p215, %p216
    %p218 = scmp.ne.s32.totalorder %s207, %s208
    %p219 = scmp.eq.s32.totalorder %s21, 0
    %p220 = por %p218, %p219
    %p221 = scmp.ne.s32.totalorder %s207, %s208
    %p222 = scmp.eq.s32.totalorder %s22, 1
    %p223 = por %p221, %p222
    %p225 = scmp.ne.s32.totalorder %s208, %s224
    %p226 = scmp.eq.s32.totalorder %s22, 0
    %p227 = por %p225, %p226
    %s228 = ssub.s32 %s16, %s23
    %p229 = scmp.eq.s32.totalorder %s228, 0
    %s231 = sadd.s32 %s230, 1
    %s232 = scalar_select %p229, %s230, %s231
    %p235 = pneg %p229
    %p236 = scmp.eq.s32.totalorder %s16, 1
    %p237 = por %p235, %p236
    %p238 = scmp.ne.s32.totalorder %s230, %s233
    %p239 = scmp.eq.s32.totalorder %s16, 0
    %p240 = por %p238, %p239
    %p241 = scmp.ne.s32.totalorder %s230, %s233
    %p242 = scmp.eq.s32.totalorder %s21, 1
    %p243 = por %p241, %p242
    %p244 = scmp.ne.s32.totalorder %s233, %s234
    %p245 = scmp.eq.s32.totalorder %s21, 0
    %p246 = por %p244, %p245
    %p247 = scmp.ne.s32.totalorder %s233, %s234
    %p248 = scmp.eq.s32.totalorder %s22, 1
    %p249 = por %p247, %p248
    %p251 = scmp.ne.s32.totalorder %s234, %s250
    %p252 = scmp.eq.s32.totalorder %s22, 0
    %p253 = por %p251, %p252
    %p254 = scmp.le.s32.totalorder 1, %s16
    %p255 = scmp.lt.s32.totalorder %s16, 3
    %p256 = pnand %p254, %p255
    %p257 = pneg %p256
    // Predicated region
    $region9: #{up_block_forward.4} parent=5 // pred_check
      _
    $region10: #{up_block_forward.4} parent=5 // pred_check_branch
      %259 = sbr.rel (%p256) target = $region12
    $region11: #{up_block_forward.4} parent=5 // pred_region
      %s260 = ssub.s32 %s16, 1
      // Predicated region
      $region13: #{up_block_forward.4} parent=11 // pred_check
        %p261 = pneg %p63
      $region14: #{up_block_forward.4} parent=11 // pred_check_branch
        %263 = sbr.rel (%p261) target = $region16
      $region15: #{up_block_forward.4} parent=11 // pred_region
        _
      $region16: #{up_block_forward.4} parent=11 // pred_fallthru
        _
      // Predicated region
      $region17: #{up_block_forward.4} parent=11 // pred_check
        %p264 = pneg %p84
      $region18: #{up_block_forward.4} parent=11 // pred_check_branch
        %266 = sbr.rel (%p264) target = $region20
      $region19: #{up_block_forward.4} parent=11 // pred_region
        _
      $region20: #{up_block_forward.4} parent=11 // pred_fallthru
        _
      // Predicated region
      $region21: #{up_block_forward.4} parent=11 // pred_check
        %p267 = pneg %p131
      $region22: #{up_block_forward.4} parent=11 // pred_check_branch
        %269 = sbr.rel (%p267) target = $region24
      $region23: #{up_block_forward.4} parent=11 // pred_region
        _
      $region24: #{up_block_forward.4} parent=11 // pred_fallthru
        _
      // Predicated region
      $region25: #{up_block_forward.4} parent=11 // pred_check
        %p270 = pneg %p152
      $region26: #{up_block_forward.4} parent=11 // pred_check_branch
        %272 = sbr.rel (%p270) target = $region28
      $region27: #{up_block_forward.4} parent=11 // pred_region
        _
      $region28: #{up_block_forward.4} parent=11 // pred_fallthru
        _
      // Predicated region
      $region29: #{up_block_forward.4} parent=11 // pred_check
        %p273 = pneg %p173
      $region30: #{up_block_forward.4} parent=11 // pred_check_branch
        %275 = sbr.rel (%p273) target = $region32
      $region31: #{up_block_forward.4} parent=11 // pred_region
        _
      $region32: #{up_block_forward.4} parent=11 // pred_fallthru
        _
      // Predicated region
      $region33: #{up_block_forward.4} parent=11 // pred_check
        %p276 = pneg %p194
      $region34: #{up_block_forward.4} parent=11 // pred_check_branch
        %278 = sbr.rel (%p276) target = $region36
      $region35: #{up_block_forward.4} parent=11 // pred_region
        _
      $region36: #{up_block_forward.4} parent=11 // pred_fallthru
        _
    $region12: #{up_block_forward.4} parent=5 // pred_fallthru
      _
    %p279 = scmp.lt.s32.totalorder %s16, 2
    // Predicated region
    $region37: #{up_block_forward.4} parent=5 // pred_check
      %p280 = pneg %p279
    $region38: #{up_block_forward.4} parent=5 // pred_check_branch
      %282 = sbr.rel (%p280) target = $region40
    $region39: #{up_block_forward.4} parent=5 // pred_region
      // Predicated region
      $region41: #{up_block_forward.4} parent=39 // pred_check
        %p283 = pneg %p36
      $region42: #{up_block_forward.4} parent=39 // pred_check_branch
        %285 = sbr.rel (%p283) target = $region44
      $region43: #{up_block_forward.4} parent=39 // pred_region
        %p286 = scmp.lt.s32.totalorder %s16, 1
        %s287 = scalar_select %p286, %s16, 1
        %s288 = smul.addr %s287, 2
        %s289 = smul.addr %s288, 4
        %s290 = scalar_lea.vmem %s0, %s289
      $region44: #{up_block_forward.4} parent=39 // pred_fallthru
        _
      // Predicated region
      $region45: #{up_block_forward.4} parent=39 // pred_check
        %p291 = pneg %p104
      $region46: #{up_block_forward.4} parent=39 // pred_check_branch
        %293 = sbr.rel (%p291) target = $region48
      $region47: #{up_block_forward.4} parent=39 // pred_region
        %p294 = scmp.lt.s32.totalorder %s16, 1
        %s295 = scalar_select %p294, %s16, 1
        %s296 = smul.addr %s295, 2
        %s297 = smul.addr %s296, 8
        %s298 = scalar_lea.vmem %s3, %s297
      $region48: #{up_block_forward.4} parent=39 // pred_fallthru
        _
    $region40: #{up_block_forward.4} parent=5 // pred_fallthru
      _
    %p299 = scmp.le.s32.totalorder 1, %s16
    %p300 = scmp.lt.s32.totalorder %s16, 3
    %p301 = pnand %p299, %p300
    %p302 = pneg %p301
    // Predicated region
    $region49: #{up_block_forward.4} parent=5 // pred_check
      _
    $region50: #{up_block_forward.4} parent=5 // pred_check_branch
      %304 = sbr.rel (%p301) target = $region52
    $region51: #{up_block_forward.4} parent=5 // pred_region
      %s305 = ssub.s32 %s16, 1
      %p306 = scmp.lt.s32.totalorder %s21, 1
      %s307 = scalar_select %p306, %s21, 1
      %s308 = smul.addr %s307, 2
      %s309 = smul.addr %s308, 4
      %s310 = scalar_lea.vmem %s0, %s309
      %p311 = pneg %p42
      %p312 = pneg %p39
      %p313 = pneg %p63
      %p314 = pneg %p60
      %p315 = pneg %p84
      %p316 = pneg %p81
      %p317 = scmp.lt.s32.totalorder %s21, 1
      %s318 = scalar_select %p317, %s21, 1
      %s319 = smul.addr %s318, 2
      %s320 = smul.addr %s319, 8
      %s321 = scalar_lea.vmem %s3, %s320
      %p322 = pneg %p110
      %p323 = pneg %p107
      %p324 = pneg %p131
      %p325 = pneg %p128
      %p326 = pneg %p152
      %p327 = pneg %p149
      %p328 = pneg %p173
      %p329 = pneg %p170
      %p330 = pneg %p194
      %p331 = pneg %p191
      %p332 = pneg %p220
      %p333 = pneg %p217
      %p334 = scmp.lt.s32.totalorder %s21, 1
      %s335 = scalar_select %p334, %s21, 1
      %s336 = smul.addr %s335, 2
      %s337 = smul.addr %s336, 4
      %s338 = scalar_lea.vmem %s8, %s337
      %p339 = pneg %p246
      %p340 = pneg %p243
      %p341 = scmp.lt.s32.totalorder %s21, 1
      %s342 = scalar_select %p341, %s21, 1
      %s343 = smul.addr %s342, 2
      %s344 = scalar_lea.vmem %s9, %s343
      %p345 = scmp.lt.s32.totalorder %s21, 1
      %s346 = scalar_select %p345, %s21, 1
      %s347 = smul.addr %s346, 2
      %s348 = smul.addr %s347, 4
      %s349 = scalar_lea.vmem %s0, %s348
      %p350 = scmp.lt.s32.totalorder %s21, 1
      %s351 = scalar_select %p350, %s21, 1
      %s352 = smul.addr %s351, 2
      %s353 = smul.addr %s352, 8
      %s354 = scalar_lea.vmem %s3, %s353
      %p355 = scmp.lt.s32.totalorder %s21, 1
      %s356 = scalar_select %p355, %s21, 1
      %s357 = smul.addr %s356, 2
      %s358 = smul.addr %s357, 4
      %s359 = scalar_lea.vmem %s8, %s358
      %p360 = scmp.lt.s32.totalorder %s21, 1
      %s361 = scalar_select %p360, %s21, 1
      %s362 = smul.addr %s361, 2
      %s363 = scalar_lea.vmem %s9, %s362
      %365 = vst [vmem:[#allocation2] sm:$0xff] 0.0
      %366 = vst [vmem:[#allocation2 + $0x8] sm:$0xff] 0.0
      %367 = vst [vmem:[#allocation2 + $0x10] sm:$0xff] 0.0
      %368 = vst [vmem:[#allocation2 + $0x18] sm:$0xff] 0.0
      %369 = vst [vmem:[#allocation2 + $0x20] sm:$0xff] 0.0
      %370 = vst [vmem:[#allocation2 + $0x28] sm:$0xff] 0.0
      %vm371 = vcmask 785408
      %372 = vst.msk [vmem:[#allocation2 + $0x30] sm:$0xff] %vm371, 0.0
      %373 = vst [vmem:[#allocation2 + $0x38] sm:$0xff] 0.0
      %374 = vst [vmem:[#allocation2 + $0x40] sm:$0xff] 0.0
      %375 = vst [vmem:[#allocation2 + $0x48] sm:$0xff] 0.0
      %376 = vst [vmem:[#allocation2 + $0x50] sm:$0xff] 0.0
      %377 = vst [vmem:[#allocation2 + $0x58] sm:$0xff] 0.0
      %378 = vst [vmem:[#allocation2 + $0x60] sm:$0xff] 0.0
      %379 = vst.msk [vmem:[#allocation2 + $0x68] sm:$0xff] %vm371, 0.0
      %v380 = vld [vmem:[%s349] sm:$0xf]
      %v381 = vld [vmem:[%s349 + $0x4] sm:$0xf]
      %v382 = vunpack.c.l.bf16 %v380
      %v383 = vunpack.c.l.bf16 %v381
      %v384 = vld [vmem:[%s1] sm:$0x1]
      %v386 = vlaneseq
      %v387 = vshrl.u32 %v386, 7
      %v388 = vsub.s32 0, %v387
      %v389 = vrot.slane %v384, %v388
      %v391 = vmul.f32 %v382, %v389
      %v392 = vmul.f32 %v383, %v389
      %v393 = vld [vmem:[%s2] sm:$0x1]
      %v395 = vlaneseq
      %v396 = vshrl.u32 %v395, 7
      %v397 = vsub.s32 0, %v396
      %v398 = vrot.slane %v393, %v397
      %v400 = vadd.f32 %v391, %v398
      %v401 = vadd.f32 %v392, %v398
      %vm404 = vcmask 1040384
      %v405 = vrot.slane %v400, 7
      %v406 = vrot.slane %v401, 7
      %v407 = vsel %vm404, %v405, %v406
      %408 = vrot.lane.b32.xlu0 %v405, 8
      %v409 = vpop.permute.xlu0 %408
      %410 = vrot.lane.b32.xlu0 %v407, 8
      %v411 = vpop.permute.xlu0 %410
      %vm414 = vcmask 1047617
      %415 = vst.msk [vmem:[#allocation2] sm:$0xfe] %vm414, %v409
      %vm416 = vcmask 64513
      %417 = vst.msk [vmem:[#allocation2 + $0x8] sm:$0xfe] %vm416, %v409
      %vm418 = vcmask 1047616
      %419 = vst.msk [vmem:[#allocation2 + $0x38] sm:$0xff] %vm418, %v411
      %vm420 = vcmask 64512
      %421 = vst.msk [vmem:[#allocation2 + $0x40] sm:$0xff] %vm420, %v411
      %422 = vrot.lane.b32.xlu0 %v400, 24
      %v423 = vpop.permute.xlu0 %422
      %424 = vrot.lane.b32.xlu0 %v401, 24
      %v425 = vpop.permute.xlu0 %424
      %vm428 = vcmask 1047744
      %429 = vst.msk [vmem:[#allocation2 + $0x8] sm:$0xff] %vm428, %v423
      %vm430 = vcmask 195584
      %431 = vst.msk [vmem:[#allocation2 + $0x10] sm:$0xff] %vm430, %v423
      %432 = vst.msk [vmem:[#allocation2 + $0x40] sm:$0xff] %vm428, %v425
      %433 = vst.msk [vmem:[#allocation2 + $0x48] sm:$0xff] %vm430, %v425
      %vm434 = vcmask 1046528
      %v435 = vrot.slane %v400, 1
      %v436 = vrot.slane %v401, 1
      %v437 = vsel %vm434, %v435, %v436
      %438 = vrot.lane.b32.xlu0 %v437, 40
      %v439 = vpop.permute.xlu0 %438
      %440 = vrot.lane.b32.xlu0 %v436, 40
      %v441 = vpop.permute.xlu0 %440
      %vm444 = vcmask 1047872
      %445 = vst.msk [vmem:[#allocation2 + $0x10] sm:$0xff] %vm444, %v439
      %vm446 = vcmask 326656
      %447 = vst.msk [vmem:[#allocation2 + $0x18] sm:$0xff] %vm446, %v439
      %vm448 = vcmask 1046848
      %449 = vst.msk [vmem:[#allocation2 + $0x48] sm:$0x7f] %vm448, %v441
      %vm450 = vcmask 325632
      %451 = vst.msk [vmem:[#allocation2 + $0x50] sm:$0x7f] %vm450, %v441
      %v452 = vld [vmem:[%s354] sm:$0xff]
      %v453 = vld [vmem:[%s354 + $0x8] sm:$0xff]
      %v454 = vld [vmem:[%s4] sm:$0x1]
      %v456 = vlaneseq
      %v457 = vshrl.u32 %v456, 7
      %v458 = vsub.s32 0, %v457
      %v459 = vrot.slane %v454, %v458
      %v461 = vmul.f32 %v452, %v459
      %v462 = vmul.f32 %v453, %v459
      %v463 = vld [vmem:[%s5] sm:$0x1]
      %v465 = vlaneseq
      %v466 = vshrl.u32 %v465, 7
      %v467 = vsub.s32 0, %v466
      %v468 = vrot.slane %v463, %v467
      %v470 = vadd.f32 %v461, %v468
      %v471 = vadd.f32 %v462, %v468
      %v474 = vrot.slane %v470, 7
      %v475 = vrot.slane %v471, 7
      %v476 = vsel %vm404, %v474, %v475
      %477 = vrot.lane.b32.xlu0 %v474, 56
      %v478 = vpop.permute.xlu0 %477
      %479 = vrot.lane.b32.xlu0 %v476, 56
      %v480 = vpop.permute.xlu0 %479
      %vm483 = vcmask 1048001
      %484 = vst.msk [vmem:[#allocation2 + $0x18] sm:$0xfe] %vm483, %v478
      %vm485 = vcmask 457729
      %486 = vst.msk [vmem:[#allocation2 + $0x20] sm:$0xfe] %vm485, %v478
      %vm487 = vcmask 1048000
      %488 = vst.msk [vmem:[#allocation2 + $0x50] sm:$0xff] %vm487, %v480
      %vm489 = vcmask 457728
      %490 = vst.msk [vmem:[#allocation2 + $0x58] sm:$0xff] %vm489, %v480
      %491 = vrot.lane.b32.xlu0 %v470, 72
      %v492 = vpop.permute.xlu0 %491
      %493 = vrot.lane.b32.xlu0 %v471, 72
      %v494 = vpop.permute.xlu0 %493
      %vm497 = vcmask 1048128
      %498 = vst.msk [vmem:[#allocation2 + $0x20] sm:$0xff] %vm497, %v492
      %vm499 = vcmask 588800
      %500 = vst.msk [vmem:[#allocation2 + $0x28] sm:$0xff] %vm499, %v492
      %501 = vst.msk [vmem:[#allocation2 + $0x58] sm:$0xff] %vm497, %v494
      %502 = vst.msk [vmem:[#allocation2 + $0x60] sm:$0xff] %vm499, %v494
      %v503 = vrot.slane %v470, 1
      %v504 = vrot.slane %v471, 1
      %v505 = vsel %vm434, %v503, %v504
      %506 = vrot.lane.b32.xlu0 %v505, 88
      %v507 = vpop.permute.xlu0 %506
      %508 = vrot.lane.b32.xlu0 %v504, 88
      %v509 = vpop.permute.xlu0 %508
      %vm512 = vcmask 1048256
      %513 = vst.msk [vmem:[#allocation2 + $0x28] sm:$0xff] %vm512, %v507
      %vm514 = vcmask 719872
      %515 = vst.msk [vmem:[#allocation2 + $0x30] sm:$0xff] %vm514, %v507
      %vm516 = vcmask 1047232
      %517 = vst.msk [vmem:[#allocation2 + $0x60] sm:$0x7f] %vm516, %v509
      %vm518 = vcmask 718848
      %519 = vst.msk [vmem:[#allocation2 + $0x68] sm:$0x7f] %vm518, %v509
      %v520 = vld [vmem:[#allocation2] sm:$0xff]
      %v521 = vld [vmem:[#allocation2 + $0x8] sm:$0xff]
      %v522 = vld [vmem:[#allocation2 + $0x10] sm:$0xff]
      %v523 = vld [vmem:[#allocation2 + $0x18] sm:$0xff]
      %v524 = vld [vmem:[#allocation2 + $0x20] sm:$0xff]
      %v525 = vld [vmem:[#allocation2 + $0x28] sm:$0xff]
      %v526 = vld [vmem:[#allocation2 + $0x30] sm:$0xff]
      %v527 = vld [vmem:[#allocation2 + $0x38] sm:$0xff]
      %v528 = vld [vmem:[#allocation2 + $0x40] sm:$0xff]
      %v529 = vld [vmem:[#allocation2 + $0x48] sm:$0xff]
      %v530 = vld [vmem:[#allocation2 + $0x50] sm:$0xff]
      %v531 = vld [vmem:[#allocation2 + $0x58] sm:$0xff]
      %v532 = vld [vmem:[#allocation2 + $0x60] sm:$0xff]
      %v533 = vld [vmem:[#allocation2 + $0x68] sm:$0xff]
      %v534 = vpack.c.bf16 %v527, %v520
      %v535 = vpack.c.bf16 %v528, %v521
      %v536 = vpack.c.bf16 %v529, %v522
      %v537 = vpack.c.bf16 %v530, %v523
      %v538 = vpack.c.bf16 %v531, %v524
      %v539 = vpack.c.bf16 %v532, %v525
      %v540 = vpack.c.bf16 %v533, %v526
      %v541 = vld [vmem:[%s6] sm:$0xf]
      %v542 = vld [vmem:[%s6 + $0x4] sm:$0xf]
      %v543 = vld [vmem:[%s6 + $0x8] sm:$0xf]
      %v544 = vld [vmem:[%s6 + $0xc] sm:$0xf]
      %v545 = vld [vmem:[%s6 + $0x10] sm:$0xf]
      %v546 = vld [vmem:[%s6 + $0x14] sm:$0xf]
      %v547 = vld [vmem:[%s6 + $0x18] sm:$0xf]
      %v548 = vld [vmem:[%s6 + $0x1c] sm:$0xf]
      %v549 = vld [vmem:[%s6 + $0x20] sm:$0xf]
      %v550 = vld [vmem:[%s6 + $0x24] sm:$0xf]
      %v551 = vld [vmem:[%s6 + $0x28] sm:$0xf]
      %v552 = vld [vmem:[%s6 + $0x2c] sm:$0xf]
      %v553 = vld [vmem:[%s6 + $0x30] sm:$0xf]
      %v554 = vld [vmem:[%s6 + $0x34] sm:$0xf]
      %v555 = vld [vmem:[%s6 + $0x38] sm:$0xf]
      %v556 = vld [vmem:[%s6 + $0x3c] sm:$0xf]
      %v557 = vld [vmem:[%s6 + $0x40] sm:$0xf]
      %v558 = vld [vmem:[%s6 + $0x44] sm:$0xf]
      %v559 = vld [vmem:[%s6 + $0x48] sm:$0xf]
      %v560 = vld [vmem:[%s6 + $0x4c] sm:$0xf]
      %v561 = vld [vmem:[%s6 + $0x50] sm:$0xf]
      %v562 = vld [vmem:[%s6 + $0x54] sm:$0xf]
      %v563 = vld [vmem:[%s6 + $0x58] sm:$0xf]
      %v564 = vld [vmem:[%s6 + $0x5c] sm:$0xf]
      %v565 = vld [vmem:[%s6 + $0x60] sm:$0xf]
      %v566 = vld [vmem:[%s6 + $0x64] sm:$0xf]
      %v567 = vld [vmem:[%s6 + $0x68] sm:$0xf]
      %v568 = vld [vmem:[%s6 + $0x6c] sm:$0xf]
      %v569 = vld [vmem:[%s6 + $0x70] sm:$0xf]
      %v570 = vld [vmem:[%s6 + $0x74] sm:$0xf]
      %v571 = vld [vmem:[%s6 + $0x78] sm:$0xf]
      %v572 = vld [vmem:[%s6 + $0x7c] sm:$0xf]
      %v573 = vld [vmem:[%s6 + $0x80] sm:$0xf]
      %v574 = vld [vmem:[%s6 + $0x84] sm:$0xf]
      %v575 = vld [vmem:[%s6 + $0x88] sm:$0xf]
      %v576 = vld [vmem:[%s6 + $0x8c] sm:$0xf]
      %v577 = vld [vmem:[%s6 + $0x90] sm:$0xf]
      %v578 = vld [vmem:[%s6 + $0x94] sm:$0xf]
      %v579 = vld [vmem:[%s6 + $0x98] sm:$0xf]
      %v580 = vld [vmem:[%s6 + $0x9c] sm:$0xf]
      %v581 = vld [vmem:[%s6 + $0xa0] sm:$0xf]
      %v582 = vld [vmem:[%s6 + $0xa4] sm:$0xf]
      %v583 = vld [vmem:[%s6 + $0xa8] sm:$0xf]
      %v584 = vld [vmem:[%s6 + $0xac] sm:$0xf]
      %v585 = vld [vmem:[%s6 + $0xb0] sm:$0xf]
      %v586 = vld [vmem:[%s6 + $0xb4] sm:$0xf]
      %v587 = vld [vmem:[%s6 + $0xb8] sm:$0xf]
      %v588 = vld [vmem:[%s6 + $0xbc] sm:$0xf]
      %v589 = vld [vmem:[%s6 + $0xc0] sm:$0xf]
      %v590 = vld [vmem:[%s6 + $0xc4] sm:$0xf]
      %v591 = vld [vmem:[%s6 + $0xc8] sm:$0xf]
      %v592 = vld [vmem:[%s6 + $0xcc] sm:$0xf]
      %v593 = vld [vmem:[%s6 + $0xd0] sm:$0xf]
      %v594 = vld [vmem:[%s6 + $0xd4] sm:$0xf]
      %v595 = vld [vmem:[%s6 + $0xd8] sm:$0xf]
      %v596 = vld [vmem:[%s6 + $0xdc] sm:$0xf]
      %v597 = vld [vmem:[%s6 + $0xe0] sm:$0xf]
      %v598 = vld [vmem:[%s6 + $0xe4] sm:$0xf]
      %v599 = vld [vmem:[%s6 + $0xe8] sm:$0xf]
      %v600 = vld [vmem:[%s6 + $0xec] sm:$0xf]
      %v601 = vld [vmem:[%s6 + $0xf0] sm:$0xf]
      %v602 = vld [vmem:[%s6 + $0xf4] sm:$0xf]
      %v603 = vld [vmem:[%s6 + $0xf8] sm:$0xf]
      %v604 = vld [vmem:[%s6 + $0xfc] sm:$0xf]
      %v605 = vld [vmem:[%s6 + $0x100] sm:$0xf]
      %v606 = vld [vmem:[%s6 + $0x104] sm:$0xf]
      %v607 = vld [vmem:[%s6 + $0x108] sm:$0xf]
      %v608 = vld [vmem:[%s6 + $0x10c] sm:$0xf]
      %v609 = vld [vmem:[%s6 + $0x110] sm:$0xf]
      %v610 = vld [vmem:[%s6 + $0x114] sm:$0xf]
      %v611 = vld [vmem:[%s6 + $0x118] sm:$0xf]
      %v612 = vld [vmem:[%s6 + $0x11c] sm:$0xf]
      %v613 = vld [vmem:[%s6 + $0x120] sm:$0xf]
      %v614 = vld [vmem:[%s6 + $0x124] sm:$0xf]
      %v615 = vld [vmem:[%s6 + $0x128] sm:$0xf]
      %v616 = vld [vmem:[%s6 + $0x12c] sm:$0xf]
      %v617 = vld [vmem:[%s6 + $0x130] sm:$0xf]
      %v618 = vld [vmem:[%s6 + $0x134] sm:$0xf]
      %v619 = vld [vmem:[%s6 + $0x138] sm:$0xf]
      %v620 = vld [vmem:[%s6 + $0x13c] sm:$0xf]
      %v621 = vld [vmem:[%s6 + $0x140] sm:$0xf]
      %v622 = vld [vmem:[%s6 + $0x144] sm:$0xf]
      %v623 = vld [vmem:[%s6 + $0x148] sm:$0xf]
      %v624 = vld [vmem:[%s6 + $0x14c] sm:$0xf]
      %v625 = vld [vmem:[%s6 + $0x150] sm:$0xf]
      %v626 = vld [vmem:[%s6 + $0x154] sm:$0xf]
      %v627 = vld [vmem:[%s6 + $0x158] sm:$0xf]
      %v628 = vld [vmem:[%s6 + $0x15c] sm:$0xf]
      %v629 = vld [vmem:[%s6 + $0x160] sm:$0xf]
      %v630 = vld [vmem:[%s6 + $0x164] sm:$0xf]
      %v631 = vld [vmem:[%s6 + $0x168] sm:$0xf]
      %v632 = vld [vmem:[%s6 + $0x16c] sm:$0xf]
      %v633 = vld [vmem:[%s6 + $0x170] sm:$0xf]
      %v634 = vld [vmem:[%s6 + $0x174] sm:$0xf]
      %v635 = vld [vmem:[%s6 + $0x178] sm:$0xf]
      %v636 = vld [vmem:[%s6 + $0x17c] sm:$0xf]
      %v637 = vld [vmem:[%s6 + $0x180] sm:$0xf]
      %v638 = vld [vmem:[%s6 + $0x184] sm:$0xf]
      %v639 = vld [vmem:[%s6 + $0x188] sm:$0xf]
      %v640 = vld [vmem:[%s6 + $0x18c] sm:$0xf]
      %v641 = vld [vmem:[%s6 + $0x190] sm:$0xf]
      %v642 = vld [vmem:[%s6 + $0x194] sm:$0xf]
      %v643 = vld [vmem:[%s6 + $0x198] sm:$0xf]
      %v644 = vld [vmem:[%s6 + $0x19c] sm:$0xf]
      %v645 = vld [vmem:[%s6 + $0x1a0] sm:$0xf]
      %v646 = vld [vmem:[%s6 + $0x1a4] sm:$0xf]
      %v647 = vld [vmem:[%s6 + $0x1a8] sm:$0xf]
      %v648 = vld [vmem:[%s6 + $0x1ac] sm:$0xf]
      %v649 = vld [vmem:[%s7] sm:$0x1]
      %v651 = vlaneseq
      %v652 = vshrl.u32 %v651, 7
      %v653 = vsub.s32 0, %v652
      %v654 = vrot.slane %v649, %v653
      %v764 = vunpack.c.l.b16 %v541
      %v765 = vunpack.c.l.b16 %v542
      %v766 = vunpack.c.l.b16 %v543
      %v767 = vunpack.c.l.b16 %v544
      %v768 = vunpack.c.l.b16 %v545
      %v769 = vunpack.c.l.b16 %v546
      %v770 = vunpack.c.l.b16 %v547
      %v771 = vunpack.c.l.b16 %v548
      %v772 = vunpack.c.l.b16 %v549
      %v773 = vunpack.c.l.b16 %v550
      %v774 = vunpack.c.l.b16 %v551
      %v775 = vunpack.c.l.b16 %v552
      %v776 = vunpack.c.l.b16 %v553
      %v777 = vunpack.c.l.b16 %v554
      %v778 = vunpack.c.l.b16 %v555
      %v779 = vunpack.c.l.b16 %v556
      %v780 = vunpack.c.l.b16 %v557
      %v781 = vunpack.c.l.b16 %v558
      %v782 = vunpack.c.l.b16 %v559
      %v783 = vunpack.c.l.b16 %v560
      %v784 = vunpack.c.l.b16 %v561
      %v785 = vunpack.c.l.b16 %v562
      %v786 = vunpack.c.l.b16 %v563
      %v787 = vunpack.c.l.b16 %v564
      %v788 = vunpack.c.l.b16 %v565
      %v789 = vunpack.c.l.b16 %v566
      %v790 = vunpack.c.l.b16 %v567
      %v791 = vunpack.c.l.b16 %v568
      %v792 = vunpack.c.l.b16 %v569
      %v793 = vunpack.c.l.b16 %v570
      %v794 = vunpack.c.l.b16 %v571
      %v795 = vunpack.c.l.b16 %v572
      %v796 = vunpack.c.l.b16 %v573
      %v797 = vunpack.c.l.b16 %v574
      %v798 = vunpack.c.l.b16 %v575
      %v799 = vunpack.c.l.b16 %v576
      %v800 = vunpack.c.l.b16 %v577
      %v801 = vunpack.c.l.b16 %v578
      %v802 = vunpack.c.l.b16 %v579
      %v803 = vunpack.c.l.b16 %v580
      %v804 = vunpack.c.l.b16 %v581
      %v805 = vunpack.c.l.b16 %v582
      %v806 = vunpack.c.l.b16 %v583
      %v807 = vunpack.c.l.b16 %v584
      %v808 = vunpack.c.l.b16 %v585
      %v809 = vunpack.c.l.b16 %v586
      %v810 = vunpack.c.l.b16 %v587
      %v811 = vunpack.c.l.b16 %v588
      %v812 = vunpack.c.l.b16 %v589
      %v813 = vunpack.c.l.b16 %v590
      %v814 = vunpack.c.l.b16 %v591
      %v815 = vunpack.c.l.b16 %v592
      %v816 = vunpack.c.l.b16 %v593
      %v817 = vunpack.c.l.b16 %v594
      %v818 = vunpack.c.l.b16 %v595
      %v819 = vunpack.c.l.b16 %v596
      %v820 = vunpack.c.l.b16 %v597
      %v821 = vunpack.c.l.b16 %v598
      %v822 = vunpack.c.l.b16 %v599
      %v823 = vunpack.c.l.b16 %v600
      %v824 = vunpack.c.l.b16 %v601
      %v825 = vunpack.c.l.b16 %v602
      %v826 = vunpack.c.l.b16 %v603
      %v827 = vunpack.c.l.b16 %v604
      %v828 = vunpack.c.l.b16 %v605
      %v829 = vunpack.c.l.b16 %v606
      %v830 = vunpack.c.l.b16 %v607
      %v831 = vunpack.c.l.b16 %v608
      %v832 = vunpack.c.l.b16 %v609
      %v833 = vunpack.c.l.b16 %v610
      %v834 = vunpack.c.l.b16 %v611
      %v835 = vunpack.c.l.b16 %v612
      %v836 = vunpack.c.l.b16 %v613
      %v837 = vunpack.c.l.b16 %v614
      %v838 = vunpack.c.l.b16 %v615
      %v839 = vunpack.c.l.b16 %v616
      %v840 = vunpack.c.l.b16 %v617
      %v841 = vunpack.c.l.b16 %v618
      %v842 = vunpack.c.l.b16 %v619
      %v843 = vunpack.c.l.b16 %v620
      %v844 = vunpack.c.l.b16 %v621
      %v845 = vunpack.c.l.b16 %v622
      %v846 = vunpack.c.l.b16 %v623
      %v847 = vunpack.c.l.b16 %v624
      %v848 = vunpack.c.l.b16 %v625
      %v849 = vunpack.c.l.b16 %v626
      %v850 = vunpack.c.l.b16 %v627
      %v851 = vunpack.c.l.b16 %v628
      %v852 = vunpack.c.l.b16 %v629
      %v853 = vunpack.c.l.b16 %v630
      %v854 = vunpack.c.l.b16 %v631
      %v855 = vunpack.c.l.b16 %v632
      %v856 = vunpack.c.l.b16 %v633
      %v857 = vunpack.c.l.b16 %v634
      %v858 = vunpack.c.l.b16 %v635
      %v859 = vunpack.c.l.b16 %v636
      %v860 = vunpack.c.l.b16 %v637
      %v861 = vunpack.c.l.b16 %v638
      %v862 = vunpack.c.l.b16 %v639
      %v863 = vunpack.c.l.b16 %v640
      %v864 = vunpack.c.l.b16 %v641
      %v865 = vunpack.c.l.b16 %v642
      %v866 = vunpack.c.l.b16 %v643
      %v867 = vunpack.c.l.b16 %v644
      %v868 = vunpack.c.l.b16 %v645
      %v869 = vunpack.c.l.b16 %v646
      %v870 = vunpack.c.l.b16 %v647
      %v871 = vunpack.c.l.b16 %v648
      %v872 = vpack.c.b16 %v765, %v764
      %v873 = vpack.c.b16 %v767, %v766
      %v874 = vpack.c.b16 %v769, %v768
      %v875 = vpack.c.b16 %v771, %v770
      %v876 = vpack.c.b16 %v773, %v772
      %v877 = vpack.c.b16 %v775, %v774
      %v878 = vpack.c.b16 %v777, %v776
      %v879 = vpack.c.b16 %v779, %v778
      %v880 = vpack.c.b16 %v781, %v780
      %v881 = vpack.c.b16 %v783, %v782
      %v882 = vpack.c.b16 %v785, %v784
      %v883 = vpack.c.b16 %v787, %v786
      %v884 = vpack.c.b16 %v789, %v788
      %v885 = vpack.c.b16 %v791, %v790
      %v886 = vpack.c.b16 %v793, %v792
      %v887 = vpack.c.b16 %v795, %v794
      %v888 = vpack.c.b16 %v797, %v796
      %v889 = vpack.c.b16 %v799, %v798
      %v890 = vpack.c.b16 %v801, %v800
      %v891 = vpack.c.b16 %v803, %v802
      %v892 = vpack.c.b16 %v805, %v804
      %v893 = vpack.c.b16 %v807, %v806
      %v894 = vpack.c.b16 %v809, %v808
      %v895 = vpack.c.b16 %v811, %v810
      %v896 = vpack.c.b16 %v813, %v812
      %v897 = vpack.c.b16 %v815, %v814
      %v898 = vpack.c.b16 %v817, %v816
      %v899 = vpack.c.b16 %v819, %v818
      %v900 = vpack.c.b16 %v821, %v820
      %v901 = vpack.c.b16 %v823, %v822
      %v902 = vpack.c.b16 %v825, %v824
      %v903 = vpack.c.b16 %v827, %v826
      %v904 = vpack.c.b16 %v829, %v828
      %v905 = vpack.c.b16 %v831, %v830
      %v906 = vpack.c.b16 %v833, %v832
      %v907 = vpack.c.b16 %v835, %v834
      %v908 = vpack.c.b16 %v837, %v836
      %v909 = vpack.c.b16 %v839, %v838
      %v910 = vpack.c.b16 %v841, %v840
      %v911 = vpack.c.b16 %v843, %v842
      %v912 = vpack.c.b16 %v845, %v844
      %v913 = vpack.c.b16 %v847, %v846
      %v914 = vpack.c.b16 %v849, %v848
      %v915 = vpack.c.b16 %v851, %v850
      %v916 = vpack.c.b16 %v853, %v852
      %v917 = vpack.c.b16 %v855, %v854
      %v918 = vpack.c.b16 %v857, %v856
      %v919 = vpack.c.b16 %v859, %v858
      %v920 = vpack.c.b16 %v861, %v860
      %v921 = vpack.c.b16 %v863, %v862
      %v922 = vpack.c.b16 %v865, %v864
      %v923 = vpack.c.b16 %v867, %v866
      %v924 = vpack.c.b16 %v869, %v868
      %v925 = vpack.c.b16 %v871, %v870
      %v981 = vsel %vm371, %v540, 0
      %983 = vmatprep.subr.bf16.mxu0 0
      %984 = vmatpush1.bf16.msra.mxu0 %v872
      %985 = vmatprep.subr.bf16.mxu0 0
      %986 = vmatpush1.bf16.msra.mxu0 %v873
      %987 = vmatprep.subr.bf16.mxu0 0
      %988 = vmatpush1.bf16.msra.mxu0 %v874
      %989 = vmatprep.subr.bf16.mxu0 0
      %990 = vmatpush1.bf16.msra.mxu0 %v875
      %991 = vmatprep.subr.bf16.mxu0 0
      %992 = vmatpush1.bf16.msra.mxu0 %v876
      %993 = vmatprep.subr.bf16.mxu0 0
      %994 = vmatpush1.bf16.msra.mxu0 %v877
      %995 = vmatprep.subr.bf16.mxu0 0
      %996 = vmatpush1.bf16.msra.mxu0 %v878
      %997 = vmatprep.subr.bf16.mxu0 0
      %998 = vmatpush1.bf16.msra.mxu0 %v879
      %999 = vmatprep.subr.bf16.mxu0 0
      %1000 = vmatpush1.bf16.msra.mxu0 %v880
      %1001 = vmatprep.subr.bf16.mxu0 0
      %1002 = vmatpush1.bf16.msra.mxu0 %v881
      %1003 = vmatprep.subr.bf16.mxu0 0
      %1004 = vmatpush1.bf16.msra.mxu0 %v882
      %1005 = vmatprep.subr.bf16.mxu0 0
      %1006 = vmatpush1.bf16.msra.mxu0 %v883
      %1007 = vmatprep.subr.bf16.mxu0 0
      %1008 = vmatpush1.bf16.msra.mxu0 %v884
      %1009 = vmatprep.subr.bf16.mxu0 0
      %1010 = vmatpush1.bf16.msra.mxu0 %v885
      %1011 = vmatprep.subr.bf16.mxu0 0
      %1012 = vmatpush1.bf16.msra.mxu0 %v886
      %1013 = vmatprep.subr.bf16.mxu0 0
      %1014 = vmatpush1.bf16.msra.mxu0 %v887
      %1015 = vmatprep.mubr.bf16.mxu0 %v535
      %1016 = vmatmul.mubr.bf16.gmra.mrb[0].mxu0 %v534
      %v1017 = vpop.f32.mrb[0].mxu0
      %v1018 = vadd.f32 %v654, %v1017
      %v1019 = vpop.f32.mrb[0].mxu0
      %v1020 = vpop.f32.mrb[0].mxu0
      %v1021 = vadd.f32 %v654, %v1020
      %v1022 = vpop.f32.mrb[0].mxu0
      %1023 = vdwg.mxu0
      %1024 = vmatprep.subr.bf16.mxu0 0
      %1025 = vmatpush1.bf16.msra.mxu0 %v888
      %1026 = vmatprep.subr.bf16.mxu0 0
      %1027 = vmatpush1.bf16.msra.mxu0 %v889
      %1028 = vmatprep.subr.bf16.mxu0 0
      %1029 = vmatpush1.bf16.msra.mxu0 %v890
      %1030 = vmatprep.subr.bf16.mxu0 0
      %1031 = vmatpush1.bf16.msra.mxu0 %v891
      %1032 = vmatprep.subr.bf16.mxu0 0
      %1033 = vmatpush1.bf16.msra.mxu0 %v892
      %1034 = vmatprep.subr.bf16.mxu0 0
      %1035 = vmatpush1.bf16.msra.mxu0 %v893
      %1036 = vmatprep.subr.bf16.mxu0 0
      %1037 = vmatpush1.bf16.msra.mxu0 %v894
      %1038 = vmatprep.subr.bf16.mxu0 0
      %1039 = vmatpush1.bf16.msra.mxu0 %v895
      %1040 = vmatprep.subr.bf16.mxu0 0
      %1041 = vmatpush1.bf16.msra.mxu0 %v896
      %1042 = vmatprep.subr.bf16.mxu0 0
      %1043 = vmatpush1.bf16.msra.mxu0 %v897
      %1044 = vmatprep.subr.bf16.mxu0 0
      %1045 = vmatpush1.bf16.msra.mxu0 %v898
      %1046 = vmatprep.subr.bf16.mxu0 0
      %1047 = vmatpush1.bf16.msra.mxu0 %v899
      %1048 = vmatprep.subr.bf16.mxu0 0
      %1049 = vmatpush1.bf16.msra.mxu0 %v900
      %1050 = vmatprep.subr.bf16.mxu0 0
      %1051 = vmatpush1.bf16.msra.mxu0 %v901
      %1052 = vmatprep.subr.bf16.mxu0 0
      %1053 = vmatpush1.bf16.msra.mxu0 %v902
      %1054 = vmatprep.subr.bf16.mxu0 0
      %1055 = vmatpush1.bf16.msra.mxu0 %v903
      %1056 = vmatprep.mubr.bf16.mxu0 %v537
      %1057 = vmatmul.mubr.bf16.gmra.mrb[0].mxu0 %v536
      %v1058 = vpop.f32.mrb[0].mxu0
      %v1059 = vadd.f32 %v1018, %v1058
      %v1060 = vpop.f32.mrb[0].mxu0
      %v1061 = vpop.f32.mrb[0].mxu0
      %v1062 = vadd.f32 %v1021, %v1061
      %v1063 = vpop.f32.mrb[0].mxu0
      %1064 = vdwg.mxu0
      %1065 = vmatprep.subr.bf16.mxu0 0
      %1066 = vmatpush1.bf16.msra.mxu0 %v904
      %1067 = vmatprep.subr.bf16.mxu0 0
      %1068 = vmatpush1.bf16.msra.mxu0 %v905
      %1069 = vmatprep.subr.bf16.mxu0 0
      %1070 = vmatpush1.bf16.msra.mxu0 %v906
      %1071 = vmatprep.subr.bf16.mxu0 0
      %1072 = vmatpush1.bf16.msra.mxu0 %v907
      %1073 = vmatprep.subr.bf16.mxu0 0
      %1074 = vmatpush1.bf16.msra.mxu0 %v908
      %1075 = vmatprep.subr.bf16.mxu0 0
      %1076 = vmatpush1.bf16.msra.mxu0 %v909
      %1077 = vmatprep.subr.bf16.mxu0 0
      %1078 = vmatpush1.bf16.msra.mxu0 %v910
      %1079 = vmatprep.subr.bf16.mxu0 0
      %1080 = vmatpush1.bf16.msra.mxu0 %v911
      %1081 = vmatprep.subr.bf16.mxu0 0
      %1082 = vmatpush1.bf16.msra.mxu0 %v912
      %1083 = vmatprep.subr.bf16.mxu0 0
      %1084 = vmatpush1.bf16.msra.mxu0 %v913
      %1085 = vmatprep.subr.bf16.mxu0 0
      %1086 = vmatpush1.bf16.msra.mxu0 %v914
      %1087 = vmatprep.subr.bf16.mxu0 0
      %1088 = vmatpush1.bf16.msra.mxu0 %v915
      %1089 = vmatprep.subr.bf16.mxu0 0
      %1090 = vmatpush1.bf16.msra.mxu0 %v916
      %1091 = vmatprep.subr.bf16.mxu0 0
      %1092 = vmatpush1.bf16.msra.mxu0 %v917
      %1093 = vmatprep.subr.bf16.mxu0 0
      %1094 = vmatpush1.bf16.msra.mxu0 %v918
      %1095 = vmatprep.subr.bf16.mxu0 0
      %1096 = vmatpush1.bf16.msra.mxu0 %v919
      %1097 = vmatprep.mubr.bf16.mxu0 %v539
      %1098 = vmatmul.mubr.bf16.gmra.mrb[0].mxu0 %v538
      %v1099 = vpop.f32.mrb[0].mxu0
      %v1100 = vadd.f32 %v1059, %v1099
      %v1101 = vpop.f32.mrb[0].mxu0
      %v1102 = vpop.f32.mrb[0].mxu0
      %v1103 = vadd.f32 %v1062, %v1102
      %v1104 = vpop.f32.mrb[0].mxu0
      %1105 = vdwg.mxu0
      %1106 = vmatprep.subr.bf16.mxu0 0
      %1107 = vmatpush1.bf16.msra.mxu0 %v920
      %1108 = vmatprep.subr.bf16.mxu0 0
      %1109 = vmatpush1.bf16.msra.mxu0 %v921
      %1110 = vmatprep.subr.bf16.mxu0 0
      %1111 = vmatpush1.bf16.msra.mxu0 %v922
      %1112 = vmatprep.subr.bf16.mxu0 0
      %1113 = vmatpush1.bf16.msra.mxu0 %v923
      %1114 = vmatprep.subr.bf16.mxu0 0
      %1115 = vmatpush1.bf16.msra.mxu0 %v924
      %1116 = vmatprep.subr.bf16.mxu0 0
      %1117 = vmatpush1.bf16.msra.mxu0 %v925
      %1118 = vmatprep.subr.bf16.mxu0 0
      %1119 = vmatpush1.bf16.msra.mxu0 0
      %1120 = vmatprep.subr.bf16.mxu0 0
      %1121 = vmatpush1.bf16.msra.mxu0 0
      %1122 = vmatprep.subr.bf16.mxu0 0
      %1123 = vmatpush1.bf16.msra.mxu0 0
      %1124 = vmatprep.subr.bf16.mxu0 0
      %1125 = vmatpush1.bf16.msra.mxu0 0
      %1126 = vmatprep.subr.bf16.mxu0 0
      %1127 = vmatpush1.bf16.msra.mxu0 0
      %1128 = vmatprep.subr.bf16.mxu0 0
      %1129 = vmatpush1.bf16.msra.mxu0 0
      %1130 = vmatprep.subr.bf16.mxu0 0
      %1131 = vmatpush1.bf16.msra.mxu0 0
      %1132 = vmatprep.subr.bf16.mxu0 0
      %1133 = vmatpush1.bf16.msra.mxu0 0
      %1134 = vmatprep.subr.bf16.mxu0 0
      %1135 = vmatpush1.bf16.msra.mxu0 0
      %1136 = vmatprep.subr.bf16.mxu0 0
      %1137 = vmatpush1.bf16.msra.mxu0 0
      %1138 = vmatprep.mubr.bf16.mxu0 0
      %1139 = vmatmul.mubr.bf16.gmra.mrb[0].mxu0 %v981
      %v1140 = vpop.f32.mrb[0].mxu0
      %v1141 = vadd.f32 %v1100, %v1140
      %v1142 = vpop.f32.mrb[0].mxu0
      %v1143 = vpop.f32.mrb[0].mxu0
      %v1144 = vadd.f32 %v1103, %v1143
      %v1145 = vpop.f32.mrb[0].mxu0
      %1146 = vdwg.mxu0
      %v1147 = vmul.f32 %v1141, 0.5
      %v1148 = vmul.f32 %v1144, 0.5
      %v1149 = vmul.f32 %v1141, 0.70710677
      %v1150 = vmul.f32 %v1144, 0.70710677
      %v1151 = verf.f32.pop %v1149
      %v1152 = verf.f32.pop %v1150
      %v1153 = vadd.f32 %v1151, 1.0
      %v1154 = vadd.f32 %v1152, 1.0
      %v1155 = vmul.f32 %v1147, %v1153
      %v1156 = vmul.f32 %v1148, %v1154
      %v1157 = vadd.f32 %v1155, %v1156
      %v1158 = vrot.slane %v1157, 4
      %v1159 = vadd.f32 %v1157, %v1158
      %v1160 = vrot.slane %v1159, 2
      %v1161 = vadd.f32 %v1159, %v1160
      %v1162 = vrot.slane %v1161, 1
      %v1163 = vadd.f32 %v1161, %v1162
      %v1164 = vmul.f32 %v1155, %v1155
      %v1165 = vmul.f32 %v1156, %v1156
      %v1166 = vadd.f32 %v1164, %v1165
      %v1167 = vrot.slane %v1166, 4
      %v1168 = vadd.f32 %v1166, %v1167
      %v1169 = vrot.slane %v1168, 2
      %v1170 = vadd.f32 %v1168, %v1169
      %v1171 = vrot.slane %v1170, 1
      %v1172 = vadd.f32 %v1170, %v1171
      %v1173 = vsel %vm404, %v1163, %v1172
      %1174 = vst [vmem:[%s363] sm:$0x3] %v1173
      %v1175 = vpack.c.bf16 %v1156, %v1155
      %v1177 = vunpack.c.l.b16 %v1175
      %v1178 = vunpack.c.h.b16 %v1175
      %v1179 = vpack.c.b16 %v1177, %v1177
      %v1180 = vpack.c.b16 %v1178, %v1178
      %1183 = vst [vmem:[%s359] sm:$0xf] %v1179
      %1184 = vst [vmem:[%s359 + $0x4] sm:$0xf] %v1180
      %p1185 = scmp.lt.s32.totalorder %s21, 1
      %s1186 = scalar_select %p1185, %s21, 1
      %s1187 = smul.addr %s1186, 2
      %s1188 = smul.addr %s1187, 4
      %s1189 = scalar_lea.vmem %s8, %s1188
      %p1190 = scmp.lt.s32.totalorder %s21, 1
      %s1191 = scalar_select %p1190, %s21, 1
      %s1192 = smul.addr %s1191, 2
      %s1193 = scalar_lea.vmem %s9, %s1192
      // Predicated region
      $region53: #{up_block_forward.4} parent=51 // pred_check
        %p1194 = pneg %p217
      $region54: #{up_block_forward.4} parent=51 // pred_check_branch
        %1196 = sbr.rel (%p1194) target = $region56
      $region55: #{up_block_forward.4} parent=51 // pred_region
        _
      $region56: #{up_block_forward.4} parent=51 // pred_fallthru
        _
      // Predicated region
      $region57: #{up_block_forward.4} parent=51 // pred_check
        %p1197 = pneg %p243
      $region58: #{up_block_forward.4} parent=51 // pred_check_branch
        %1199 = sbr.rel (%p1197) target = $region60
      $region59: #{up_block_forward.4} parent=51 // pred_region
        _
      $region60: #{up_block_forward.4} parent=51 // pred_fallthru
        _
    $region52: #{up_block_forward.4} parent=5 // pred_fallthru
      _
    %p1200 = scmp.le.s32.totalorder 2, %s16
    // Predicated region
    $region61: #{up_block_forward.4} parent=5 // pred_check
      %p1201 = pneg %p1200
    $region62: #{up_block_forward.4} parent=5 // pred_check_branch
      %1203 = sbr.rel (%p1201) target = $region64
    $region63: #{up_block_forward.4} parent=5 // pred_region
      %s1204 = ssub.s32 %s16, 2
      // Predicated region
      $region65: #{up_block_forward.4} parent=63 // pred_check
        %p1205 = pneg %p223
      $region66: #{up_block_forward.4} parent=63 // pred_check_branch
        %1207 = sbr.rel (%p1205) target = $region68
      $region67: #{up_block_forward.4} parent=63 // pred_region
        %p1208 = scmp.lt.s32.totalorder %s22, 1
        %s1209 = scalar_select %p1208, %s22, 1
        %s1210 = smul.addr %s1209, 2
        %s1211 = smul.addr %s1210, 4
        %s1212 = scalar_lea.vmem %s8, %s1211
      $region68: #{up_block_forward.4} parent=63 // pred_fallthru
        _
      // Predicated region
      $region69: #{up_block_forward.4} parent=63 // pred_check
        %p1213 = pneg %p249
      $region70: #{up_block_forward.4} parent=63 // pred_check_branch
        %1215 = sbr.rel (%p1213) target = $region72
      $region71: #{up_block_forward.4} parent=63 // pred_region
        %p1216 = scmp.lt.s32.totalorder %s22, 1
        %s1217 = scalar_select %p1216, %s22, 1
        %s1218 = smul.addr %s1217, 2
        %s1219 = scalar_lea.vmem %s9, %s1218
      $region72: #{up_block_forward.4} parent=63 // pred_fallthru
        _
    $region64: #{up_block_forward.4} parent=5 // pred_fallthru
      _
  $region6: #{up_block_forward.4} parent=0 // loop_footer
    %s20 = sadd.s32 1, %s16
  $region7: #{up_block_forward.4} parent=0 // loop_footer_branch
    %15 = sbr.rel target = $region3
  $region8: #{up_block_forward.4} parent=0 // loop_exit
    _

// kernel: up_block_forward.5
$region0: #{up_block_forward.5}
  #allocation0 [shape = 'u32[]', space=smem, size = 0x4, offset = 0x4, fixed_abs, tag = 'smem constant byte address 0x4 - core index']
  #allocation1 [shape = 'u32[144,128]{1,0:T(1,128)}', space=vmem, size = 0x12000, scoped, tag = 'internal scratch']
  #allocation2 [shape = 'f32[16,432]{1,0:T(8,128)}', space=vmem, size = 0x8000, scoped, tag = 'scratch operand']
  %s0 = inlined_call_operand.vmem [shape: bf16[2,16,128], index: 0, kind: input, shape index: {}]
  %s1 = inlined_call_operand.vmem [shape: f32[1,128], index: 1, kind: input, shape index: {}]
  %s2 = inlined_call_operand.vmem [shape: f32[1,128], index: 2, kind: input, shape index: {}]
  %s3 = inlined_call_operand.vmem [shape: bf16[432,128], index: 3, kind: input, shape index: {}]
  %s4 = inlined_call_operand.vmem [shape: f32[1,128], index: 4, kind: input, shape index: {}]
  %s5 = inlined_call_operand.vmem [shape: f32[2,16,128], index: 5, kind: output, shape index: {}]
  %s6 = sld [smem:[#allocation0]]
  $region53: #{up_block_forward.5} parent=0
    _
  %s8 = ssub.s32 1, %s6
  %s9 = scalar_select 0, %s8, %s6
  loop: start=0, step=1, limit=4
  $region2: #{up_block_forward.5} parent=0 // loop_pre_header
    _
  $region3: #{up_block_forward.5} parent=0 // loop_header
    %s11 = sphi 0, %s15
    %p12 = scmp.ge.s32.totalorder %s11, 4
    %s21 = sphi 0, %s23
    %s24 = sphi 0, %s21
    %s25 = sphi 0, %s24
    %s41 = sphi 0, %s25
    %s45 = sphi 0, %s45
    %s47 = sphi 0, %s45
    %s48 = sphi 0, %s47
    %s62 = sphi 0, %s48
    %s66 = sphi 0, %s66
    %s68 = sphi 0, %s66
    %s69 = sphi 0, %s68
    %s83 = sphi 0, %s69
    %s87 = sphi 0, %s87
    %s89 = sphi 0, %s87
    %s90 = sphi 0, %s89
    %s104 = sphi 0, %s90
    %s108 = sphi 0, %s108
    %s110 = sphi 0, %s108
    %s111 = sphi 0, %s110
    %s125 = sphi 0, %s111
    %s131 = sphi 0, %s133
    %s134 = sphi 0, %s131
    %s135 = sphi 0, %s134
    %s151 = sphi 0, %s135
  $region4: #{up_block_forward.5} parent=0 // loop_header_branch
    %14 = sbr.rel (%p12) target = $region8
  $region5: #{up_block_forward.5} parent=0 // loop_body
    %s16 = ssub.s32 %s11, 1
    %s17 = ssub.s32 %s11, 2
    %s18 = sadd.s32 %s11, 1
    %s19 = ssub.s32 %s11, %s18
    %p20 = scmp.eq.s32.totalorder %s19, 0
    %s22 = sadd.s32 %s21, 1
    %s23 = scalar_select %p20, %s21, %s22
    %p26 = pneg %p20
    %p27 = scmp.eq.s32.totalorder %s11, 1
    %p28 = por %p26, %p27
    %p29 = scmp.ne.s32.totalorder %s21, %s24
    %p30 = scmp.eq.s32.totalorder %s11, 0
    %p31 = por %p29, %p30
    %p32 = scmp.ne.s32.totalorder %s21, %s24
    %p33 = scmp.eq.s32.totalorder %s16, 1
    %p34 = por %p32, %p33
    %p35 = scmp.ne.s32.totalorder %s24, %s25
    %p36 = scmp.eq.s32.totalorder %s16, 0
    %p37 = por %p35, %p36
    %p38 = scmp.ne.s32.totalorder %s24, %s25
    %p39 = scmp.eq.s32.totalorder %s17, 1
    %p40 = por %p38, %p39
    %p42 = scmp.ne.s32.totalorder %s25, %s41
    %p43 = scmp.eq.s32.totalorder %s17, 0
    %p44 = por %p42, %p43
    %s46 = sadd.s32 %s45, 1
    %p49 = scmp.eq.s32.totalorder %s11, 1
    %p50 = scmp.ne.s32.totalorder %s45, %s47
    %p51 = scmp.eq.s32.totalorder %s11, 0
    %p52 = por %p50, %p51
    %p53 = scmp.ne.s32.totalorder %s45, %s47
    %p54 = scmp.eq.s32.totalorder %s16, 1
    %p55 = por %p53, %p54
    %p56 = scmp.ne.s32.totalorder %s47, %s48
    %p57 = scmp.eq.s32.totalorder %s16, 0
    %p58 = por %p56, %p57
    %p59 = scmp.ne.s32.totalorder %s47, %s48
    %p60 = scmp.eq.s32.totalorder %s17, 1
    %p61 = por %p59, %p60
    %p63 = scmp.ne.s32.totalorder %s48, %s62
    %p64 = scmp.eq.s32.totalorder %s17, 0
    %p65 = por %p63, %p64
    %s67 = sadd.s32 %s66, 1
    %p70 = scmp.eq.s32.totalorder %s11, 1
    %p71 = scmp.ne.s32.totalorder %s66, %s68
    %p72 = scmp.eq.s32.totalorder %s11, 0
    %p73 = por %p71, %p72
    %p74 = scmp.ne.s32.totalorder %s66, %s68
    %p75 = scmp.eq.s32.totalorder %s16, 1
    %p76 = por %p74, %p75
    %p77 = scmp.ne.s32.totalorder %s68, %s69
    %p78 = scmp.eq.s32.totalorder %s16, 0
    %p79 = por %p77, %p78
    %p80 = scmp.ne.s32.totalorder %s68, %s69
    %p81 = scmp.eq.s32.totalorder %s17, 1
    %p82 = por %p80, %p81
    %p84 = scmp.ne.s32.totalorder %s69, %s83
    %p85 = scmp.eq.s32.totalorder %s17, 0
    %p86 = por %p84, %p85
    %s88 = sadd.s32 %s87, 1
    %p91 = scmp.eq.s32.totalorder %s11, 1
    %p92 = scmp.ne.s32.totalorder %s87, %s89
    %p93 = scmp.eq.s32.totalorder %s11, 0
    %p94 = por %p92, %p93
    %p95 = scmp.ne.s32.totalorder %s87, %s89
    %p96 = scmp.eq.s32.totalorder %s16, 1
    %p97 = por %p95, %p96
    %p98 = scmp.ne.s32.totalorder %s89, %s90
    %p99 = scmp.eq.s32.totalorder %s16, 0
    %p100 = por %p98, %p99
    %p101 = scmp.ne.s32.totalorder %s89, %s90
    %p102 = scmp.eq.s32.totalorder %s17, 1
    %p103 = por %p101, %p102
    %p105 = scmp.ne.s32.totalorder %s90, %s104
    %p106 = scmp.eq.s32.totalorder %s17, 0
    %p107 = por %p105, %p106
    %s109 = sadd.s32 %s108, 1
    %p112 = scmp.eq.s32.totalorder %s11, 1
    %p113 = scmp.ne.s32.totalorder %s108, %s110
    %p114 = scmp.eq.s32.totalorder %s11, 0
    %p115 = por %p113, %p114
    %p116 = scmp.ne.s32.totalorder %s108, %s110
    %p117 = scmp.eq.s32.totalorder %s16, 1
    %p118 = por %p116, %p117
    %p119 = scmp.ne.s32.totalorder %s110, %s111
    %p120 = scmp.eq.s32.totalorder %s16, 0
    %p121 = por %p119, %p120
    %p122 = scmp.ne.s32.totalorder %s110, %s111
    %p123 = scmp.eq.s32.totalorder %s17, 1
    %p124 = por %p122, %p123
    %p126 = scmp.ne.s32.totalorder %s111, %s125
    %p127 = scmp.eq.s32.totalorder %s17, 0
    %p128 = por %p126, %p127
    %s129 = ssub.s32 %s11, %s18
    %p130 = scmp.eq.s32.totalorder %s129, 0
    %s132 = sadd.s32 %s131, 1
    %s133 = scalar_select %p130, %s131, %s132
    %p136 = pneg %p130
    %p137 = scmp.eq.s32.totalorder %s11, 1
    %p138 = por %p136, %p137
    %p139 = scmp.ne.s32.totalorder %s131, %s134
    %p140 = scmp.eq.s32.totalorder %s11, 0
    %p141 = por %p139, %p140
    %p142 = scmp.ne.s32.totalorder %s131, %s134
    %p143 = scmp.eq.s32.totalorder %s16, 1
    %p144 = por %p142, %p143
    %p145 = scmp.ne.s32.totalorder %s134, %s135
    %p146 = scmp.eq.s32.totalorder %s16, 0
    %p147 = por %p145, %p146
    %p148 = scmp.ne.s32.totalorder %s134, %s135
    %p149 = scmp.eq.s32.totalorder %s17, 1
    %p150 = por %p148, %p149
    %p152 = scmp.ne.s32.totalorder %s135, %s151
    %p153 = scmp.eq.s32.totalorder %s17, 0
    %p154 = por %p152, %p153
    %p155 = scmp.le.s32.totalorder 1, %s11
    %p156 = scmp.lt.s32.totalorder %s11, 3
    %p157 = pnand %p155, %p156
    %p158 = pneg %p157
    // Predicated region
    $region9: #{up_block_forward.5} parent=5 // pred_check
      _
    $region10: #{up_block_forward.5} parent=5 // pred_check_branch
      %160 = sbr.rel (%p157) target = $region12
    $region11: #{up_block_forward.5} parent=5 // pred_region
      %s161 = ssub.s32 %s11, 1
      // Predicated region
      $region13: #{up_block_forward.5} parent=11 // pred_check
        %p162 = pneg %p58
      $region14: #{up_block_forward.5} parent=11 // pred_check_branch
        %164 = sbr.rel (%p162) target = $region16
      $region15: #{up_block_forward.5} parent=11 // pred_region
        _
      $region16: #{up_block_forward.5} parent=11 // pred_fallthru
        _
      // Predicated region
      $region17: #{up_block_forward.5} parent=11 // pred_check
        %p165 = pneg %p79
      $region18: #{up_block_forward.5} parent=11 // pred_check_branch
        %167 = sbr.rel (%p165) target = $region20
      $region19: #{up_block_forward.5} parent=11 // pred_region
        _
      $region20: #{up_block_forward.5} parent=11 // pred_fallthru
        _
      // Predicated region
      $region21: #{up_block_forward.5} parent=11 // pred_check
        %p168 = pneg %p100
      $region22: #{up_block_forward.5} parent=11 // pred_check_branch
        %170 = sbr.rel (%p168) target = $region24
      $region23: #{up_block_forward.5} parent=11 // pred_region
        _
      $region24: #{up_block_forward.5} parent=11 // pred_fallthru
        _
      // Predicated region
      $region25: #{up_block_forward.5} parent=11 // pred_check
        %p171 = pneg %p121
      $region26: #{up_block_forward.5} parent=11 // pred_check_branch
        %173 = sbr.rel (%p171) target = $region28
      $region27: #{up_block_forward.5} parent=11 // pred_region
        _
      $region28: #{up_block_forward.5} parent=11 // pred_fallthru
        _
    $region12: #{up_block_forward.5} parent=5 // pred_fallthru
      _
    %p174 = scmp.lt.s32.totalorder %s11, 2
    // Predicated region
    $region29: #{up_block_forward.5} parent=5 // pred_check
      %p175 = pneg %p174
    $region30: #{up_block_forward.5} parent=5 // pred_check_branch
      %177 = sbr.rel (%p175) target = $region32
    $region31: #{up_block_forward.5} parent=5 // pred_region
      // Predicated region
      $region33: #{up_block_forward.5} parent=31 // pred_check
        %p178 = pneg %p31
      $region34: #{up_block_forward.5} parent=31 // pred_check_branch
        %180 = sbr.rel (%p178) target = $region36
      $region35: #{up_block_forward.5} parent=31 // pred_region
        %p181 = scmp.lt.s32.totalorder %s11, 1
        %s182 = scalar_select %p181, %s11, 1
        %s183 = smul.addr %s182, 2
        %s184 = smul.addr %s183, 4
        %s185 = scalar_lea.vmem %s0, %s184
      $region36: #{up_block_forward.5} parent=31 // pred_fallthru
        _
    $region32: #{up_block_forward.5} parent=5 // pred_fallthru
      _
    %p186 = scmp.le.s32.totalorder 1, %s11
    %p187 = scmp.lt.s32.totalorder %s11, 3
    %p188 = pnand %p186, %p187
    %p189 = pneg %p188
    // Predicated region
    $region37: #{up_block_forward.5} parent=5 // pred_check
      _
    $region38: #{up_block_forward.5} parent=5 // pred_check_branch
      %191 = sbr.rel (%p188) target = $region40
    $region39: #{up_block_forward.5} parent=5 // pred_region
      %s192 = ssub.s32 %s11, 1
      %p193 = scmp.lt.s32.totalorder %s16, 1
      %s194 = scalar_select %p193, %s16, 1
      %s195 = smul.addr %s194, 2
      %s196 = smul.addr %s195, 4
      %s197 = scalar_lea.vmem %s0, %s196
      %p198 = pneg %p37
      %p199 = pneg %p34
      %p200 = pneg %p58
      %p201 = pneg %p55
      %p202 = pneg %p79
      %p203 = pneg %p76
      %p204 = pneg %p100
      %p205 = pneg %p97
      %p206 = pneg %p121
      %p207 = pneg %p118
      %p208 = pneg %p147
      %p209 = pneg %p144
      %p210 = scmp.lt.s32.totalorder %s16, 1
      %s211 = scalar_select %p210, %s16, 1
      %s212 = smul.addr %s211, 2
      %s213 = smul.addr %s212, 8
      %s214 = scalar_lea.vmem %s5, %s213
      %p215 = scmp.lt.s32.totalorder %s16, 1
      %s216 = scalar_select %p215, %s16, 1
      %s217 = smul.addr %s216, 2
      %s218 = smul.addr %s217, 4
      %s219 = scalar_lea.vmem %s0, %s218
      %p220 = scmp.lt.s32.totalorder %s16, 1
      %s221 = scalar_select %p220, %s16, 1
      %s222 = smul.addr %s221, 2
      %s223 = smul.addr %s222, 8
      %s224 = scalar_lea.vmem %s5, %s223
      %226 = vst [vmem:[#allocation2] sm:$0xff] 0.0
      %227 = vst [vmem:[#allocation2 + $0x8] sm:$0xff] 0.0
      %228 = vst [vmem:[#allocation2 + $0x10] sm:$0xff] 0.0
      %vm229 = vcmask 392192
      %230 = vst.msk [vmem:[#allocation2 + $0x18] sm:$0xff] %vm229, 0.0
      %231 = vst [vmem:[#allocation2 + $0x20] sm:$0xff] 0.0
      %232 = vst [vmem:[#allocation2 + $0x28] sm:$0xff] 0.0
      %233 = vst [vmem:[#allocation2 + $0x30] sm:$0xff] 0.0
      %234 = vst.msk [vmem:[#allocation2 + $0x38] sm:$0xff] %vm229, 0.0
      %v235 = vld [vmem:[%s219] sm:$0xf]
      %v236 = vld [vmem:[%s219 + $0x4] sm:$0xf]
      %v237 = vunpack.c.l.bf16 %v235
      %v238 = vunpack.c.l.bf16 %v236
      %v239 = vld [vmem:[%s1] sm:$0x1]
      %v241 = vlaneseq
      %v242 = vshrl.u32 %v241, 7
      %v243 = vsub.s32 0, %v242
      %v244 = vrot.slane %v239, %v243
      %v246 = vmul.f32 %v237, %v244
      %v247 = vmul.f32 %v238, %v244
      %v248 = vld [vmem:[%s2] sm:$0x1]
      %v250 = vlaneseq
      %v251 = vshrl.u32 %v250, 7
      %v252 = vsub.s32 0, %v251
      %v253 = vrot.slane %v248, %v252
      %v255 = vadd.f32 %v246, %v253
      %v256 = vadd.f32 %v247, %v253
      %vm259 = vcmask 1040384
      %v260 = vrot.slane %v255, 7
      %v261 = vrot.slane %v256, 7
      %v262 = vsel %vm259, %v260, %v261
      %263 = vrot.lane.b32.xlu0 %v260, 8
      %v264 = vpop.permute.xlu0 %263
      %265 = vrot.lane.b32.xlu0 %v262, 8
      %v266 = vpop.permute.xlu0 %265
      %vm269 = vcmask 1047617
      %270 = vst.msk [vmem:[#allocation2] sm:$0xfe] %vm269, %v264
      %vm271 = vcmask 64513
      %272 = vst.msk [vmem:[#allocation2 + $0x8] sm:$0xfe] %vm271, %v264
      %vm273 = vcmask 1047616
      %274 = vst.msk [vmem:[#allocation2 + $0x20] sm:$0xff] %vm273, %v266
      %vm275 = vcmask 64512
      %276 = vst.msk [vmem:[#allocation2 + $0x28] sm:$0xff] %vm275, %v266
      %277 = vrot.lane.b32.xlu0 %v255, 24
      %v278 = vpop.permute.xlu0 %277
      %279 = vrot.lane.b32.xlu0 %v256, 24
      %v280 = vpop.permute.xlu0 %279
      %vm283 = vcmask 1047744
      %284 = vst.msk [vmem:[#allocation2 + $0x8] sm:$0xff] %vm283, %v278
      %vm285 = vcmask 195584
      %286 = vst.msk [vmem:[#allocation2 + $0x10] sm:$0xff] %vm285, %v278
      %287 = vst.msk [vmem:[#allocation2 + $0x28] sm:$0xff] %vm283, %v280
      %288 = vst.msk [vmem:[#allocation2 + $0x30] sm:$0xff] %vm285, %v280
      %vm289 = vcmask 1046528
      %v290 = vrot.slane %v255, 1
      %v291 = vrot.slane %v256, 1
      %v292 = vsel %vm289, %v290, %v291
      %293 = vrot.lane.b32.xlu0 %v292, 40
      %v294 = vpop.permute.xlu0 %293
      %295 = vrot.lane.b32.xlu0 %v291, 40
      %v296 = vpop.permute.xlu0 %295
      %vm299 = vcmask 1047872
      %300 = vst.msk [vmem:[#allocation2 + $0x10] sm:$0xff] %vm299, %v294
      %vm301 = vcmask 326656
      %302 = vst.msk [vmem:[#allocation2 + $0x18] sm:$0xff] %vm301, %v294
      %vm303 = vcmask 1046848
      %304 = vst.msk [vmem:[#allocation2 + $0x30] sm:$0x7f] %vm303, %v296
      %vm305 = vcmask 325632
      %306 = vst.msk [vmem:[#allocation2 + $0x38] sm:$0x7f] %vm305, %v296
      %v307 = vld [vmem:[#allocation2] sm:$0xff]
      %v308 = vld [vmem:[#allocation2 + $0x8] sm:$0xff]
      %v309 = vld [vmem:[#allocation2 + $0x10] sm:$0xff]
      %v310 = vld [vmem:[#allocation2 + $0x18] sm:$0xff]
      %v311 = vld [vmem:[#allocation2 + $0x20] sm:$0xff]
      %v312 = vld [vmem:[#allocation2 + $0x28] sm:$0xff]
      %v313 = vld [vmem:[#allocation2 + $0x30] sm:$0xff]
      %v314 = vld [vmem:[#allocation2 + $0x38] sm:$0xff]
      %v315 = vpack.c.bf16 %v311, %v307
      %v316 = vpack.c.bf16 %v312, %v308
      %v317 = vpack.c.bf16 %v313, %v309
      %v318 = vpack.c.bf16 %v314, %v310
      %v319 = vld [vmem:[%s3] sm:$0xf]
      %v320 = vld [vmem:[%s3 + $0x4] sm:$0xf]
      %v321 = vld [vmem:[%s3 + $0x8] sm:$0xf]
      %v322 = vld [vmem:[%s3 + $0xc] sm:$0xf]
      %v323 = vld [vmem:[%s3 + $0x10] sm:$0xf]
      %v324 = vld [vmem:[%s3 + $0x14] sm:$0xf]
      %v325 = vld [vmem:[%s3 + $0x18] sm:$0xf]
      %v326 = vld [vmem:[%s3 + $0x1c] sm:$0xf]
      %v327 = vld [vmem:[%s3 + $0x20] sm:$0xf]
      %v328 = vld [vmem:[%s3 + $0x24] sm:$0xf]
      %v329 = vld [vmem:[%s3 + $0x28] sm:$0xf]
      %v330 = vld [vmem:[%s3 + $0x2c] sm:$0xf]
      %v331 = vld [vmem:[%s3 + $0x30] sm:$0xf]
      %v332 = vld [vmem:[%s3 + $0x34] sm:$0xf]
      %v333 = vld [vmem:[%s3 + $0x38] sm:$0xf]
      %v334 = vld [vmem:[%s3 + $0x3c] sm:$0xf]
      %v335 = vld [vmem:[%s3 + $0x40] sm:$0xf]
      %v336 = vld [vmem:[%s3 + $0x44] sm:$0xf]
      %v337 = vld [vmem:[%s3 + $0x48] sm:$0xf]
      %v338 = vld [vmem:[%s3 + $0x4c] sm:$0xf]
      %v339 = vld [vmem:[%s3 + $0x50] sm:$0xf]
      %v340 = vld [vmem:[%s3 + $0x54] sm:$0xf]
      %v341 = vld [vmem:[%s3 + $0x58] sm:$0xf]
      %v342 = vld [vmem:[%s3 + $0x5c] sm:$0xf]
      %v343 = vld [vmem:[%s3 + $0x60] sm:$0xf]
      %v344 = vld [vmem:[%s3 + $0x64] sm:$0xf]
      %v345 = vld [vmem:[%s3 + $0x68] sm:$0xf]
      %v346 = vld [vmem:[%s3 + $0x6c] sm:$0xf]
      %v347 = vld [vmem:[%s3 + $0x70] sm:$0xf]
      %v348 = vld [vmem:[%s3 + $0x74] sm:$0xf]
      %v349 = vld [vmem:[%s3 + $0x78] sm:$0xf]
      %v350 = vld [vmem:[%s3 + $0x7c] sm:$0xf]
      %v351 = vld [vmem:[%s3 + $0x80] sm:$0xf]
      %v352 = vld [vmem:[%s3 + $0x84] sm:$0xf]
      %v353 = vld [vmem:[%s3 + $0x88] sm:$0xf]
      %v354 = vld [vmem:[%s3 + $0x8c] sm:$0xf]
      %v355 = vld [vmem:[%s3 + $0x90] sm:$0xf]
      %v356 = vld [vmem:[%s3 + $0x94] sm:$0xf]
      %v357 = vld [vmem:[%s3 + $0x98] sm:$0xf]
      %v358 = vld [vmem:[%s3 + $0x9c] sm:$0xf]
      %v359 = vld [vmem:[%s3 + $0xa0] sm:$0xf]
      %v360 = vld [vmem:[%s3 + $0xa4] sm:$0xf]
      %v361 = vld [vmem:[%s3 + $0xa8] sm:$0xf]
      %v362 = vld [vmem:[%s3 + $0xac] sm:$0xf]
      %v363 = vld [vmem:[%s3 + $0xb0] sm:$0xf]
      %v364 = vld [vmem:[%s3 + $0xb4] sm:$0xf]
      %v365 = vld [vmem:[%s3 + $0xb8] sm:$0xf]
      %v366 = vld [vmem:[%s3 + $0xbc] sm:$0xf]
      %v367 = vld [vmem:[%s3 + $0xc0] sm:$0xf]
      %v368 = vld [vmem:[%s3 + $0xc4] sm:$0xf]
      %v369 = vld [vmem:[%s3 + $0xc8] sm:$0xf]
      %v370 = vld [vmem:[%s3 + $0xcc] sm:$0xf]
      %v371 = vld [vmem:[%s3 + $0xd0] sm:$0xf]
      %v372 = vld [vmem:[%s3 + $0xd4] sm:$0xf]
      %v373 = vld [vmem:[%s4] sm:$0x1]
      %v375 = vlaneseq
      %v376 = vshrl.u32 %v375, 7
      %v377 = vsub.s32 0, %v376
      %v378 = vrot.slane %v373, %v377
      %v434 = vunpack.c.l.b16 %v319
      %v435 = vunpack.c.l.b16 %v320
      %v436 = vunpack.c.l.b16 %v321
      %v437 = vunpack.c.l.b16 %v322
      %v438 = vunpack.c.l.b16 %v323
      %v439 = vunpack.c.l.b16 %v324
      %v440 = vunpack.c.l.b16 %v325
      %v441 = vunpack.c.l.b16 %v326
      %v442 = vunpack.c.l.b16 %v327
      %v443 = vunpack.c.l.b16 %v328
      %v444 = vunpack.c.l.b16 %v329
      %v445 = vunpack.c.l.b16 %v330
      %v446 = vunpack.c.l.b16 %v331
      %v447 = vunpack.c.l.b16 %v332
      %v448 = vunpack.c.l.b16 %v333
      %v449 = vunpack.c.l.b16 %v334
      %v450 = vunpack.c.l.b16 %v335
      %v451 = vunpack.c.l.b16 %v336
      %v452 = vunpack.c.l.b16 %v337
      %v453 = vunpack.c.l.b16 %v338
      %v454 = vunpack.c.l.b16 %v339
      %v455 = vunpack.c.l.b16 %v340
      %v456 = vunpack.c.l.b16 %v341
      %v457 = vunpack.c.l.b16 %v342
      %v458 = vunpack.c.l.b16 %v343
      %v459 = vunpack.c.l.b16 %v344
      %v460 = vunpack.c.l.b16 %v345
      %v461 = vunpack.c.l.b16 %v346
      %v462 = vunpack.c.l.b16 %v347
      %v463 = vunpack.c.l.b16 %v348
      %v464 = vunpack.c.l.b16 %v349
      %v465 = vunpack.c.l.b16 %v350
      %v466 = vunpack.c.l.b16 %v351
      %v467 = vunpack.c.l.b16 %v352
      %v468 = vunpack.c.l.b16 %v353
      %v469 = vunpack.c.l.b16 %v354
      %v470 = vunpack.c.l.b16 %v355
      %v471 = vunpack.c.l.b16 %v356
      %v472 = vunpack.c.l.b16 %v357
      %v473 = vunpack.c.l.b16 %v358
      %v474 = vunpack.c.l.b16 %v359
      %v475 = vunpack.c.l.b16 %v360
      %v476 = vunpack.c.l.b16 %v361
      %v477 = vunpack.c.l.b16 %v362
      %v478 = vunpack.c.l.b16 %v363
      %v479 = vunpack.c.l.b16 %v364
      %v480 = vunpack.c.l.b16 %v365
      %v481 = vunpack.c.l.b16 %v366
      %v482 = vunpack.c.l.b16 %v367
      %v483 = vunpack.c.l.b16 %v368
      %v484 = vunpack.c.l.b16 %v369
      %v485 = vunpack.c.l.b16 %v370
      %v486 = vunpack.c.l.b16 %v371
      %v487 = vunpack.c.l.b16 %v372
      %v488 = vpack.c.b16 %v435, %v434
      %v489 = vpack.c.b16 %v437, %v436
      %v490 = vpack.c.b16 %v439, %v438
      %v491 = vpack.c.b16 %v441, %v440
      %v492 = vpack.c.b16 %v443, %v442
      %v493 = vpack.c.b16 %v445, %v444
      %v494 = vpack.c.b16 %v447, %v446
      %v495 = vpack.c.b16 %v449, %v448
      %v496 = vpack.c.b16 %v451, %v450
      %v497 = vpack.c.b16 %v453, %v452
      %v498 = vpack.c.b16 %v455, %v454
      %v499 = vpack.c.b16 %v457, %v456
      %v500 = vpack.c.b16 %v459, %v458
      %v501 = vpack.c.b16 %v461, %v460
      %v502 = vpack.c.b16 %v463, %v462
      %v503 = vpack.c.b16 %v465, %v464
      %v504 = vpack.c.b16 %v467, %v466
      %v505 = vpack.c.b16 %v469, %v468
      %v506 = vpack.c.b16 %v471, %v470
      %v507 = vpack.c.b16 %v473, %v472
      %v508 = vpack.c.b16 %v475, %v474
      %v509 = vpack.c.b16 %v477, %v476
      %v510 = vpack.c.b16 %v479, %v478
      %v511 = vpack.c.b16 %v481, %v480
      %v512 = vpack.c.b16 %v483, %v482
      %v513 = vpack.c.b16 %v485, %v484
      %v514 = vpack.c.b16 %v487, %v486
      %v543 = vsel %vm229, %v318, 0
      %545 = vmatprep.subr.bf16.mxu0 0
      %546 = vmatpush1.bf16.msra.mxu0 %v488
      %547 = vmatprep.subr.bf16.mxu0 0
      %548 = vmatpush1.bf16.msra.mxu0 %v489
      %549 = vmatprep.subr.bf16.mxu0 0
      %550 = vmatpush1.bf16.msra.mxu0 %v490
      %551 = vmatprep.subr.bf16.mxu0 0
      %552 = vmatpush1.bf16.msra.mxu0 %v491
      %553 = vmatprep.subr.bf16.mxu0 0
      %554 = vmatpush1.bf16.msra.mxu0 %v492
      %555 = vmatprep.subr.bf16.mxu0 0
      %556 = vmatpush1.bf16.msra.mxu0 %v493
      %557 = vmatprep.subr.bf16.mxu0 0
      %558 = vmatpush1.bf16.msra.mxu0 %v494
      %559 = vmatprep.subr.bf16.mxu0 0
      %560 = vmatpush1.bf16.msra.mxu0 %v495
      %561 = vmatprep.subr.bf16.mxu0 0
      %562 = vmatpush1.bf16.msra.mxu0 %v496
      %563 = vmatprep.subr.bf16.mxu0 0
      %564 = vmatpush1.bf16.msra.mxu0 %v497
      %565 = vmatprep.subr.bf16.mxu0 0
      %566 = vmatpush1.bf16.msra.mxu0 %v498
      %567 = vmatprep.subr.bf16.mxu0 0
      %568 = vmatpush1.bf16.msra.mxu0 %v499
      %569 = vmatprep.subr.bf16.mxu0 0
      %570 = vmatpush1.bf16.msra.mxu0 %v500
      %571 = vmatprep.subr.bf16.mxu0 0
      %572 = vmatpush1.bf16.msra.mxu0 %v501
      %573 = vmatprep.subr.bf16.mxu0 0
      %574 = vmatpush1.bf16.msra.mxu0 %v502
      %575 = vmatprep.subr.bf16.mxu0 0
      %576 = vmatpush1.bf16.msra.mxu0 %v503
      %577 = vmatprep.mubr.bf16.mxu0 %v316
      %578 = vmatmul.mubr.bf16.gmra.mrb[0].mxu0 %v315
      %v579 = vpop.f32.mrb[0].mxu0
      %v580 = vadd.f32 %v378, %v579
      %v581 = vpop.f32.mrb[0].mxu0
      %v582 = vpop.f32.mrb[0].mxu0
      %v583 = vadd.f32 %v378, %v582
      %v584 = vpop.f32.mrb[0].mxu0
      %585 = vdwg.mxu0
      %586 = vmatprep.subr.bf16.mxu0 0
      %587 = vmatpush1.bf16.msra.mxu0 %v504
      %588 = vmatprep.subr.bf16.mxu0 0
      %589 = vmatpush1.bf16.msra.mxu0 %v505
      %590 = vmatprep.subr.bf16.mxu0 0
      %591 = vmatpush1.bf16.msra.mxu0 %v506
      %592 = vmatprep.subr.bf16.mxu0 0
      %593 = vmatpush1.bf16.msra.mxu0 %v507
      %594 = vmatprep.subr.bf16.mxu0 0
      %595 = vmatpush1.bf16.msra.mxu0 %v508
      %596 = vmatprep.subr.bf16.mxu0 0
      %597 = vmatpush1.bf16.msra.mxu0 %v509
      %598 = vmatprep.subr.bf16.mxu0 0
      %599 = vmatpush1.bf16.msra.mxu0 %v510
      %600 = vmatprep.subr.bf16.mxu0 0
      %601 = vmatpush1.bf16.msra.mxu0 %v511
      %602 = vmatprep.subr.bf16.mxu0 0
      %603 = vmatpush1.bf16.msra.mxu0 %v512
      %604 = vmatprep.subr.bf16.mxu0 0
      %605 = vmatpush1.bf16.msra.mxu0 %v513
      %606 = vmatprep.subr.bf16.mxu0 0
      %607 = vmatpush1.bf16.msra.mxu0 %v514
      %608 = vmatprep.subr.bf16.mxu0 0
      %609 = vmatpush1.bf16.msra.mxu0 0
      %610 = vmatprep.subr.bf16.mxu0 0
      %611 = vmatpush1.bf16.msra.mxu0 0
      %612 = vmatprep.subr.bf16.mxu0 0
      %613 = vmatpush1.bf16.msra.mxu0 0
      %614 = vmatprep.subr.bf16.mxu0 0
      %615 = vmatpush1.bf16.msra.mxu0 0
      %616 = vmatprep.subr.bf16.mxu0 0
      %617 = vmatpush1.bf16.msra.mxu0 0
      %618 = vmatprep.mubr.bf16.mxu0 %v543
      %619 = vmatmul.mubr.bf16.gmra.mrb[0].mxu0 %v317
      %v620 = vpop.f32.mrb[0].mxu0
      %v621 = vadd.f32 %v580, %v620
      %v622 = vpop.f32.mrb[0].mxu0
      %v623 = vpop.f32.mrb[0].mxu0
      %v624 = vadd.f32 %v583, %v623
      %v625 = vpop.f32.mrb[0].mxu0
      %626 = vdwg.mxu0
      %v627 = vmul.f32 %v621, 0.5
      %v628 = vmul.f32 %v624, 0.5
      %v629 = vmul.f32 %v621, 0.70710677
      %v630 = vmul.f32 %v624, 0.70710677
      %v631 = verf.f32.pop %v629
      %v632 = verf.f32.pop %v630
      %v633 = vadd.f32 %v631, 1.0
      %v634 = vadd.f32 %v632, 1.0
      %v635 = vmul.f32 %v627, %v633
      %v636 = vmul.f32 %v628, %v634
      %637 = vst [vmem:[%s224] sm:$0xff] %v635
      %638 = vst [vmem:[%s224 + $0x8] sm:$0xff] %v636
      %p639 = scmp.lt.s32.totalorder %s16, 1
      %s640 = scalar_select %p639, %s16, 1
      %s641 = smul.addr %s640, 2
      %s642 = smul.addr %s641, 8
      %s643 = scalar_lea.vmem %s5, %s642
      // Predicated region
      $region41: #{up_block_forward.5} parent=39 // pred_check
        %p644 = pneg %p144
      $region42: #{up_block_forward.5} parent=39 // pred_check_branch
        %646 = sbr.rel (%p644) target = $region44
      $region43: #{up_block_forward.5} parent=39 // pred_region
        _
      $region44: #{up_block_forward.5} parent=39 // pred_fallthru
        _
    $region40: #{up_block_forward.5} parent=5 // pred_fallthru
      _
    %p647 = scmp.le.s32.totalorder 2, %s11
    // Predicated region
    $region45: #{up_block_forward.5} parent=5 // pred_check
      %p648 = pneg %p647
    $region46: #{up_block_forward.5} parent=5 // pred_check_branch
      %650 = sbr.rel (%p648) target = $region48
    $region47: #{up_block_forward.5} parent=5 // pred_region
      %s651 = ssub.s32 %s11, 2
      // Predicated region
      $region49: #{up_block_forward.5} parent=47 // pred_check
        %p652 = pneg %p150
      $region50: #{up_block_forward.5} parent=47 // pred_check_branch
        %654 = sbr.rel (%p652) target = $region52
      $region51: #{up_block_forward.5} parent=47 // pred_region
        %p655 = scmp.lt.s32.totalorder %s17, 1
        %s656 = scalar_select %p655, %s17, 1
        %s657 = smul.addr %s656, 2
        %s658 = smul.addr %s657, 8
        %s659 = scalar_lea.vmem %s5, %s658
      $region52: #{up_block_forward.5} parent=47 // pred_fallthru
        _
    $region48: #{up_block_forward.5} parent=5 // pred_fallthru
      _
  $region6: #{up_block_forward.5} parent=0 // loop_footer
    %s15 = sadd.s32 1, %s11
  $region7: #{up_block_forward.5} parent=0 // loop_footer_branch
    %10 = sbr.rel target = $region3
  $region8: #{up_block_forward.5} parent=0 // loop_exit
    _

</llo_original>
